<compile_context>
chip_gen: v7x
topology: tpu7x:2x2x1
jax: 0.10.0
libtpu: 0.0.40
codegen_flags: <defaults>
</compile_context>

<pallas_src>
import functools

import jax
import jax.numpy as jnp
from jax.experimental import pallas as pl
from jax.experimental.pallas import tpu as pltpu

# ---------------------------------------------------------------------------
# In-kernel math helpers (f32 elementwise)
# ---------------------------------------------------------------------------

_LN_EPS = 1e-6


def _layernorm(h, w, b):
    # PyTorch nn.LayerNorm: biased variance over the last dim, eps inside rsqrt.
    mu = jnp.mean(h, axis=-1, keepdims=True)
    var = jnp.mean((h - mu) * (h - mu), axis=-1, keepdims=True)
    return (h - mu) * jax.lax.rsqrt(var + _LN_EPS) * w + b


def _erf(z):
    # Abramowitz & Stegun 7.1.26 polynomial erf (max abs err ~1.5e-7, f32-exact);
    # avoids relying on an erf primitive lowering inside Mosaic.
    a1, a2, a3, a4, a5 = 0.254829592, -0.284496736, 1.421413741, -1.453152027, 1.061405429
    p = 0.3275911
    sgn = jnp.where(z >= 0.0, 1.0, -1.0)
    az = jnp.abs(z)
    t = pl.reciprocal(1.0 + p * az, approx=False)       # exact; keeps the divide off the VPU
    poly = t * (a1 + t * (a2 + t * (a3 + t * (a4 + t * a5))))
    return sgn * (1.0 - poly * jnp.exp(-az * az))


def _gelu(u):
    # Exact (erf-based) GELU, matching torch.nn.functional.gelu default.
    return 0.5 * u * (1.0 + _erf(u * 0.7071067811865476))


# ---------------------------------------------------------------------------
# Encoder block kernel (optionally fuses the final Encoder LayerNorm)
# ---------------------------------------------------------------------------

def _encoder_block_kernel(x_ref, ln1w, ln1b, wq, bq, wk, bk, wv, bv, wo, bo,
                          ln2w, ln2b, w1, b1, w2, b2, fnw, fnb,
                          y_ref, probs_ref, *, n_heads, head_dim, apply_final_ln):
    N = x_ref.shape[1]
    E = n_heads * head_dim
    xb = x_ref[0]                                    # (N, E) f32

    # --- attention branch --------------------------------------------------
    h = _layernorm(xb, ln1w[...], ln1b[...])
    h16 = h.astype(jnp.bfloat16)                     # bf16 operands, f32 accumulate
    q = jnp.dot(h16, wq[...], preferred_element_type=jnp.float32) + bq[...]
    k = jnp.dot(h16, wk[...], preferred_element_type=jnp.float32) + bk[...]
    v = jnp.dot(h16, wv[...], preferred_element_type=jnp.float32) + bv[...]

    # Fold the 1/sqrt(emb_size / n_heads) scale into q once (N, E) instead of per-head (N, N).
    q = q * (1.0 / (float(head_dim) ** 0.5))

    def split_heads(t):                              # 'n (h d) -> h n d'
        return jnp.transpose(t.reshape(N, n_heads, head_dim), (1, 0, 2)).astype(jnp.bfloat16)

    qh, kh, vh = split_heads(q), split_heads(k), split_heads(v)   # (H, N, D) bf16

    # Batched-head attention: one MXU contraction over all heads (no per-head loop).
    s = jnp.einsum('hnd,hmd->hnm', qh, kh, preferred_element_type=jnp.float32)
    s = s - jnp.max(s, axis=-1, keepdims=True)
    e = jnp.exp(s)
    inv_den = pl.reciprocal(jnp.sum(e, axis=-1, keepdims=True), approx=True)  # EUP slot
    probs = e * inv_den                              # (H, N, N) f32
    probs_ref[0] = probs                             # single full-block store

    ctx = jnp.einsum('hnm,hmd->hnd', probs.astype(jnp.bfloat16), vh,
                     preferred_element_type=jnp.float32)
    ctx = jnp.transpose(ctx, (1, 0, 2)).reshape(N, E)   # 'h n d -> n (h d)'

    attn_out = jnp.dot(ctx.astype(jnp.bfloat16), wo[...],
                       preferred_element_type=jnp.float32) + bo[...]
    x1 = xb + attn_out                               # residual (f32)

    # --- MLP branch ----------------------------------------------------------
    h2 = _layernorm(x1, ln2w[...], ln2b[...])
    f = _gelu(jnp.dot(h2.astype(jnp.bfloat16), w1[...],
                      preferred_element_type=jnp.float32) + b1[...])
    f = jnp.dot(f.astype(jnp.bfloat16), w2[...],
                preferred_element_type=jnp.float32) + b2[...]
    out = x1 + f                                     # residual (f32)

    if apply_final_ln:                               # static: only the last layer's kernel
        out = _layernorm(out, fnw[...], fnb[...])
    y_ref[0] = out


# ---------------------------------------------------------------------------
# Host wrappers (pallas_call plumbing)
# ---------------------------------------------------------------------------

def _full_spec(shape):
    ndim = len(shape)
    return pl.BlockSpec(shape, lambda b, _n=ndim: (0,) * _n)


def encoder_block_forward(x, p, norm_w, norm_b, *, n_heads, apply_final_norm):
    B, N, E = x.shape
    D = E // n_heads
    mlp_dim = p["w1"].shape[1]

    def bf16(w):
        return w.astype(jnp.bfloat16)

    # Matmul weights go in as bf16 (halves weight VMEM / DMA bytes); biases & LN params stay f32.
    weights = [p["ln1_w"], p["ln1_b"],
               bf16(p["wq"]), p["bq"], bf16(p["wk"]), p["bk"],
               bf16(p["wv"]), p["bv"], bf16(p["wo"]), p["bo"],
               p["ln2_w"], p["ln2_b"],
               bf16(p["w1"]), p["b1"], bf16(p["w2"]), p["b2"],
               norm_w, norm_b]

    # Explicit VMEM budget: double-buffered args + in-kernel intermediates + headroom,
    # capped at 64 MiB (v7x physical VMEM per TC).
    weight_bytes = sum(int(w.size) * w.dtype.itemsize for w in weights)
    block_bytes = 2 * N * E * 4 + n_heads * N * N * 4            # x/y blocks + probs block
    interm_bytes = 4 * (4 * n_heads * N * N + 8 * N * E + 2 * N * mlp_dim)
    vmem_limit = int(min(64 << 20,
                         max(32 << 20,
                             2 * (weight_bytes + block_bytes) + interm_bytes + (4 << 20))))

    kernel = functools.partial(_encoder_block_kernel, n_heads=n_heads, head_dim=D,
                               apply_final_ln=apply_final_norm)
    y, probs = pl.pallas_call(
        kernel,
        out_shape=(jax.ShapeDtypeStruct((B, N, E), jnp.float32),
                   jax.ShapeDtypeStruct((B, n_heads, N, N), jnp.float32)),
        grid=(B,),
        in_specs=[pl.BlockSpec((1, N, E), lambda b: (b, 0, 0))]
                 + [_full_spec(w.shape) for w in weights],
        out_specs=(pl.BlockSpec((1, N, E), lambda b: (b, 0, 0)),
                   pl.BlockSpec((1, n_heads, N, N), lambda b: (b, 0, 0, 0))),
        compiler_params=pltpu.CompilerParams(
            dimension_semantics=("parallel",),
            vmem_limit_bytes=vmem_limit),
    )(x, *weights)
    return y, probs


def encoder_forward(x, params):
    attn_probs = []
    depth = len(params["layers"])
    for i, layer_p in enumerate(params["layers"]):
        x, probs = encoder_block_forward(
            x, layer_p, params["norm_w"], params["norm_b"],
            n_heads=params["n_heads"],
            apply_final_norm=(i == depth - 1))        # final LN fused into the last block
        attn_probs.append(probs)
    return x, attn_probs


# ---------------------------------------------------------------------------
# Deterministic parameter init (matches the PyTorch __init__ shapes / schemes)
# ---------------------------------------------------------------------------

def _linear_default(key, fan_in, fan_out):
    # PyTorch nn.Linear default: U(-1/sqrt(fan_in), 1/sqrt(fan_in)) for W and b.
    kw, kb = jax.random.split(key)
    lim = 1.0 / (fan_in ** 0.5)
    w = jax.random.uniform(kw, (fan_in, fan_out), jnp.float32, -lim, lim)   # stored (in, out)
    b = jax.random.uniform(kb, (1, fan_out), jnp.float32, -lim, lim)
    return w, b


def _linear_xavier(key, fan_in, fan_out):
    # MLP._init_weights: xavier_uniform_ for W, normal(std=1e-6) for b.
    kw, kb = jax.random.split(key)
    lim = (6.0 / (fan_in + fan_out)) ** 0.5
    w = jax.random.uniform(kw, (fan_in, fan_out), jnp.float32, -lim, lim)
    b = 1e-6 * jax.random.normal(kb, (1, fan_out), jnp.float32)
    return w, b


def init_encoder_params(key, *, emb_size, depth, n_heads, mlp_dim):
    layers = []
    for layer_idx in range(depth):
        lk = jax.random.fold_in(key, layer_idx)
        kq, kk, kv, ko, k1, k2 = jax.random.split(lk, 6)
        wq, bq = _linear_default(kq, emb_size, emb_size)
        wk, bk = _linear_default(kk, emb_size, emb_size)
        wv, bv = _linear_default(kv, emb_size, emb_size)
        wo, bo = _linear_default(ko, emb_size, emb_size)
        w1, b1 = _linear_xavier(k1, emb_size, mlp_dim)
        w2, b2 = _linear_xavier(k2, mlp_dim, emb_size)
        layers.append(dict(
            ln1_w=jnp.ones((1, emb_size), jnp.float32),
            ln1_b=jnp.zeros((1, emb_size), jnp.float32),
            wq=wq, bq=bq, wk=wk, bk=bk, wv=wv, bv=bv, wo=wo, bo=bo,
            ln2_w=jnp.ones((1, emb_size), jnp.float32),
            ln2_b=jnp.zeros((1, emb_size), jnp.float32),
            w1=w1, b1=b1, w2=w2, b2=b2,
        ))
    return dict(
        layers=layers,
        n_heads=n_heads,
        norm_w=jnp.ones((1, emb_size), jnp.float32),
        norm_b=jnp.zeros((1, emb_size), jnp.float32),
    )


# ---------------------------------------------------------------------------

if __name__ == "__main__":
    B, N = 2, 8                 # batch, tokens
    EMB, HEADS, MLP_DIM, DEPTH = 32, 4, 64, 2

    key = jax.random.PRNGKey(0)
    kx, kp = jax.random.split(key)
    x = jax.random.normal(kx, (B, N, EMB), jnp.float32)   # layout: (B, N, E)

    params = init_encoder_params(kp, emb_size=EMB, depth=DEPTH,
                                 n_heads=HEADS, mlp_dim=MLP_DIM)

    encoded, attn_probs = encoder_forward(x, params)
    jax.block_until_ready(encoded)
    for p in attn_probs:
        jax.block_until_ready(p)

    assert encoded.shape == (B, N, EMB)
    assert len(attn_probs) == DEPTH
    assert all(p.shape == (B, HEADS, N, N) for p in attn_probs)
    print("KERNEL_OK")
</pallas_src>

<mosaic_0001>
module attributes {stable_mosaic.version = 11 : i64} {
  func.func @_encoder_block_kernel(%arg0: i32, %arg1: memref<1x8x32xf32, #tpu.memory_space<vmem>>, %arg2: memref<1x32xf32, #tpu.memory_space<vmem>>, %arg3: memref<1x32xf32, #tpu.memory_space<vmem>>, %arg4: memref<32x32xbf16, #tpu.memory_space<vmem>>, %arg5: memref<1x32xf32, #tpu.memory_space<vmem>>, %arg6: memref<32x32xbf16, #tpu.memory_space<vmem>>, %arg7: memref<1x32xf32, #tpu.memory_space<vmem>>, %arg8: memref<32x32xbf16, #tpu.memory_space<vmem>>, %arg9: memref<1x32xf32, #tpu.memory_space<vmem>>, %arg10: memref<32x32xbf16, #tpu.memory_space<vmem>>, %arg11: memref<1x32xf32, #tpu.memory_space<vmem>>, %arg12: memref<1x32xf32, #tpu.memory_space<vmem>>, %arg13: memref<1x32xf32, #tpu.memory_space<vmem>>, %arg14: memref<32x64xbf16, #tpu.memory_space<vmem>>, %arg15: memref<1x64xf32, #tpu.memory_space<vmem>>, %arg16: memref<64x32xbf16, #tpu.memory_space<vmem>>, %arg17: memref<1x32xf32, #tpu.memory_space<vmem>>, %arg18: memref<1x32xf32, #tpu.memory_space<vmem>>, %arg19: memref<1x32xf32, #tpu.memory_space<vmem>>, %arg20: memref<1x8x32xf32, #tpu.memory_space<vmem>>, %arg21: memref<1x4x8x8xf32, #tpu.memory_space<vmem>>) attributes {dimension_semantics = [#tpu.dimension_semantics<parallel>], iteration_bounds = array<i64: 2>, scalar_prefetch = 0 : i64, scratch_operands = 0 : i64, tpu.core_type = #tpu.core_type<tc>, window_params = [{transform_indices = @transform_0, window_bounds = array<i64: 1, 8, 32>}, {pipeline_mode = #tpu.pipeline_mode<synchronous>, transform_indices = @transform_1, window_bounds = array<i64: 1, 32>}, {pipeline_mode = #tpu.pipeline_mode<synchronous>, transform_indices = @transform_2, window_bounds = array<i64: 1, 32>}, {pipeline_mode = #tpu.pipeline_mode<synchronous>, transform_indices = @transform_3, window_bounds = array<i64: 32, 32>}, {pipeline_mode = #tpu.pipeline_mode<synchronous>, transform_indices = @transform_4, window_bounds = array<i64: 1, 32>}, {pipeline_mode = #tpu.pipeline_mode<synchronous>, transform_indices = @transform_5, window_bounds = array<i64: 32, 32>}, {pipeline_mode = #tpu.pipeline_mode<synchronous>, transform_indices = @transform_6, window_bounds = array<i64: 1, 32>}, {pipeline_mode = #tpu.pipeline_mode<synchronous>, transform_indices = @transform_7, window_bounds = array<i64: 32, 32>}, {pipeline_mode = #tpu.pipeline_mode<synchronous>, transform_indices = @transform_8, window_bounds = array<i64: 1, 32>}, {pipeline_mode = #tpu.pipeline_mode<synchronous>, transform_indices = @transform_9, window_bounds = array<i64: 32, 32>}, {pipeline_mode = #tpu.pipeline_mode<synchronous>, transform_indices = @transform_10, window_bounds = array<i64: 1, 32>}, {pipeline_mode = #tpu.pipeline_mode<synchronous>, transform_indices = @transform_11, window_bounds = array<i64: 1, 32>}, {pipeline_mode = #tpu.pipeline_mode<synchronous>, transform_indices = @transform_12, window_bounds = array<i64: 1, 32>}, {pipeline_mode = #tpu.pipeline_mode<synchronous>, transform_indices = @transform_13, window_bounds = array<i64: 32, 64>}, {pipeline_mode = #tpu.pipeline_mode<synchronous>, transform_indices = @transform_14, window_bounds = array<i64: 1, 64>}, {pipeline_mode = #tpu.pipeline_mode<synchronous>, transform_indices = @transform_15, window_bounds = array<i64: 64, 32>}, {pipeline_mode = #tpu.pipeline_mode<synchronous>, transform_indices = @transform_16, window_bounds = array<i64: 1, 32>}, {pipeline_mode = #tpu.pipeline_mode<synchronous>, transform_indices = @transform_17, window_bounds = array<i64: 1, 32>}, {pipeline_mode = #tpu.pipeline_mode<synchronous>, transform_indices = @transform_18, window_bounds = array<i64: 1, 32>}, {transform_indices = @transform_19, window_bounds = array<i64: 1, 8, 32>}, {transform_indices = @transform_20, window_bounds = array<i64: 1, 4, 8, 8>}]} {
    %c0 = arith.constant 0 : index
    %c0_0 = arith.constant 0 : index
    %c0_1 = arith.constant 0 : index
    %0 = vector.load %arg1[%c0, %c0_0, %c0_1] : memref<1x8x32xf32, #tpu.memory_space<vmem>>, vector<1x8x32xf32>
    %1 = vector.shape_cast %0 : vector<1x8x32xf32> to vector<8x32xf32>
    %c0_2 = arith.constant 0 : index
    %c0_3 = arith.constant 0 : index
    %2 = vector.load %arg2[%c0_2, %c0_3] : memref<1x32xf32, #tpu.memory_space<vmem>>, vector<1x32xf32>
    %c0_4 = arith.constant 0 : index
    %c0_5 = arith.constant 0 : index
    %3 = vector.load %arg3[%c0_4, %c0_5] : memref<1x32xf32, #tpu.memory_space<vmem>>, vector<1x32xf32>
    %cst = arith.constant dense<0.000000e+00> : vector<8xf32>
    %4 = vector.multi_reduction <add>, %1, %cst [1] : vector<8x32xf32> to vector<8xf32>
    %5 = vector.shape_cast %4 : vector<8xf32> to vector<8x1xf32>
    %cst_6 = arith.constant 3.200000e+01 : f32
    %6 = vector.broadcast %cst_6 : f32 to vector<8x1xf32>
    %7 = arith.divf %5, %6 : vector<8x1xf32>
    %8 = vector.broadcast %7 : vector<8x1xf32> to vector<8x32xf32>
    %9 = arith.subf %1, %8 : vector<8x32xf32>
    %10 = vector.broadcast %7 : vector<8x1xf32> to vector<8x32xf32>
    %11 = arith.subf %1, %10 : vector<8x32xf32>
    %12 = arith.mulf %9, %11 : vector<8x32xf32>
    %cst_7 = arith.constant dense<0.000000e+00> : vector<8xf32>
    %13 = vector.multi_reduction <add>, %12, %cst_7 [1] : vector<8x32xf32> to vector<8xf32>
    %14 = vector.shape_cast %13 : vector<8xf32> to vector<8x1xf32>
    %cst_8 = arith.constant 3.200000e+01 : f32
    %15 = vector.broadcast %cst_8 : f32 to vector<8x1xf32>
    %16 = arith.divf %14, %15 : vector<8x1xf32>
    %17 = vector.broadcast %7 : vector<8x1xf32> to vector<8x32xf32>
    %18 = arith.subf %1, %17 : vector<8x32xf32>
    %cst_9 = arith.constant 9.99999997E-7 : f32
    %19 = vector.broadcast %cst_9 : f32 to vector<8x1xf32>
    %20 = arith.addf %16, %19 : vector<8x1xf32>
    %21 = math.rsqrt %20 : vector<8x1xf32>
    %22 = vector.broadcast %21 : vector<8x1xf32> to vector<8x32xf32>
    %23 = arith.mulf %18, %22 : vector<8x32xf32>
    %24 = vector.broadcast %2 : vector<1x32xf32> to vector<8x32xf32>
    %25 = arith.mulf %23, %24 : vector<8x32xf32>
    %26 = vector.broadcast %3 : vector<1x32xf32> to vector<8x32xf32>
    %27 = arith.addf %25, %26 : vector<8x32xf32>
    %28 = arith.truncf %27 : vector<8x32xf32> to vector<8x32xbf16>
    %c0_10 = arith.constant 0 : index
    %c0_11 = arith.constant 0 : index
    %29 = vector.load %arg4[%c0_10, %c0_11] : memref<32x32xbf16, #tpu.memory_space<vmem>>, vector<32x32xbf16>
    %cst_12 = arith.constant dense<0.000000e+00> : vector<8x32xf32>
    %30 = tpu.matmul %28, %29, %cst_12 {dimension_numbers = #tpu.dot_dimension_numbers<[1], [0], [0], [1], [0, 0, 1, 1], [], []>} : vector<8x32xbf16>, vector<32x32xbf16>, vector<8x32xf32> -> vector<8x32xf32>
    %c0_13 = arith.constant 0 : index
    %c0_14 = arith.constant 0 : index
    %31 = vector.load %arg5[%c0_13, %c0_14] : memref<1x32xf32, #tpu.memory_space<vmem>>, vector<1x32xf32>
    %32 = vector.broadcast %31 : vector<1x32xf32> to vector<8x32xf32>
    %33 = arith.addf %30, %32 : vector<8x32xf32>
    %c0_15 = arith.constant 0 : index
    %c0_16 = arith.constant 0 : index
    %34 = vector.load %arg6[%c0_15, %c0_16] : memref<32x32xbf16, #tpu.memory_space<vmem>>, vector<32x32xbf16>
    %cst_17 = arith.constant dense<0.000000e+00> : vector<8x32xf32>
    %35 = tpu.matmul %28, %34, %cst_17 {dimension_numbers = #tpu.dot_dimension_numbers<[1], [0], [0], [1], [0, 0, 1, 1], [], []>} : vector<8x32xbf16>, vector<32x32xbf16>, vector<8x32xf32> -> vector<8x32xf32>
    %c0_18 = arith.constant 0 : index
    %c0_19 = arith.constant 0 : index
    %36 = vector.load %arg7[%c0_18, %c0_19] : memref<1x32xf32, #tpu.memory_space<vmem>>, vector<1x32xf32>
    %37 = vector.broadcast %36 : vector<1x32xf32> to vector<8x32xf32>
    %38 = arith.addf %35, %37 : vector<8x32xf32>
    %c0_20 = arith.constant 0 : index
    %c0_21 = arith.constant 0 : index
    %39 = vector.load %arg8[%c0_20, %c0_21] : memref<32x32xbf16, #tpu.memory_space<vmem>>, vector<32x32xbf16>
    %cst_22 = arith.constant dense<0.000000e+00> : vector<8x32xf32>
    %40 = tpu.matmul %28, %39, %cst_22 {dimension_numbers = #tpu.dot_dimension_numbers<[1], [0], [0], [1], [0, 0, 1, 1], [], []>} : vector<8x32xbf16>, vector<32x32xbf16>, vector<8x32xf32> -> vector<8x32xf32>
    %c0_23 = arith.constant 0 : index
    %c0_24 = arith.constant 0 : index
    %41 = vector.load %arg9[%c0_23, %c0_24] : memref<1x32xf32, #tpu.memory_space<vmem>>, vector<1x32xf32>
    %42 = vector.broadcast %41 : vector<1x32xf32> to vector<8x32xf32>
    %43 = arith.addf %40, %42 : vector<8x32xf32>
    %cst_25 = arith.constant 0.353553385 : f32
    %44 = vector.broadcast %cst_25 : f32 to vector<8x32xf32>
    %45 = arith.mulf %33, %44 : vector<8x32xf32>
    %46 = vector.shape_cast %45 : vector<8x32xf32> to vector<8x4x8xf32>
    %47 = tpu.transpose %46, [1, 0, 2] : vector<8x4x8xf32> -> vector<4x8x8xf32>
    %48 = arith.truncf %47 : vector<4x8x8xf32> to vector<4x8x8xbf16>
    %49 = vector.shape_cast %38 : vector<8x32xf32> to vector<8x4x8xf32>
    %50 = tpu.transpose %49, [1, 0, 2] : vector<8x4x8xf32> -> vector<4x8x8xf32>
    %51 = arith.truncf %50 : vector<4x8x8xf32> to vector<4x8x8xbf16>
    %52 = vector.shape_cast %43 : vector<8x32xf32> to vector<8x4x8xf32>
    %53 = tpu.transpose %52, [1, 0, 2] : vector<8x4x8xf32> -> vector<4x8x8xf32>
    %54 = arith.truncf %53 : vector<4x8x8xf32> to vector<4x8x8xbf16>
    "tpu.trace_start"() <{level = 10 : i32, message = "hnd,hmd->hnm"}> : () -> ()
    %cst_26 = arith.constant dense<0.000000e+00> : vector<4x8x8xf32>
    %55 = tpu.matmul %48, %51, %cst_26 {dimension_numbers = #tpu.dot_dimension_numbers<[2], [2], [1], [1], [0, 0, 0, 1, 1, 1], [0], [0]>} : vector<4x8x8xbf16>, vector<4x8x8xbf16>, vector<4x8x8xf32> -> vector<4x8x8xf32>
    "tpu.trace_stop"() : () -> ()
    %cst_27 = arith.constant dense<0xFF800000> : vector<4x8xf32>
    %56 = vector.multi_reduction <maximumf>, %55, %cst_27 [2] : vector<4x8x8xf32> to vector<4x8xf32>
    %57 = vector.shape_cast %56 : vector<4x8xf32> to vector<4x8x1xf32>
    %58 = vector.broadcast %57 : vector<4x8x1xf32> to vector<4x8x8xf32>
    %59 = arith.subf %55, %58 : vector<4x8x8xf32>
    %60 = math.exp %59 : vector<4x8x8xf32>
    %cst_28 = arith.constant dense<0.000000e+00> : vector<4x8xf32>
    %61 = vector.multi_reduction <add>, %60, %cst_28 [2] : vector<4x8x8xf32> to vector<4x8xf32>
    %62 = vector.shape_cast %61 : vector<4x8xf32> to vector<4x8x1xf32>
    %63 = tpu.reciprocal %62 {approx = true} : vector<4x8x1xf32> -> vector<4x8x1xf32>
    %64 = vector.broadcast %63 : vector<4x8x1xf32> to vector<4x8x8xf32>
    %65 = arith.mulf %60, %64 : vector<4x8x8xf32>
    %c0_29 = arith.constant 0 : index
    %c0_30 = arith.constant 0 : index
    %c0_31 = arith.constant 0 : index
    %c0_32 = arith.constant 0 : index
    %66 = vector.load %arg21[%c0_29, %c0_30, %c0_31, %c0_32] : memref<1x4x8x8xf32, #tpu.memory_space<vmem>>, vector<1x4x8x8xf32>
    %67 = vector.shape_cast %66 : vector<1x4x8x8xf32> to vector<4x8x8xf32>
    %68 = vector.shape_cast %65 : vector<4x8x8xf32> to vector<1x4x8x8xf32>
    tpu.vector_store %arg21[%c0_29, %c0_30, %c0_31, %c0_32], %68 {strides = array<i32>} : memref<1x4x8x8xf32, #tpu.memory_space<vmem>>, vector<1x4x8x8xf32>,
    %69 = arith.truncf %65 : vector<4x8x8xf32> to vector<4x8x8xbf16>
    "tpu.trace_start"() <{level = 10 : i32, message = "hnm,hmd->hnd"}> : () -> ()
    %cst_33 = arith.constant dense<0.000000e+00> : vector<4x8x8xf32>
    %70 = tpu.matmul %69, %54, %cst_33 {dimension_numbers = #tpu.dot_dimension_numbers<[2], [1], [1], [2], [0, 0, 0, 1, 1, 2], [0], [0]>} : vector<4x8x8xbf16>, vector<4x8x8xbf16>, vector<4x8x8xf32> -> vector<4x8x8xf32>
    "tpu.trace_stop"() : () -> ()
    %71 = tpu.transpose %70, [1, 0, 2] : vector<4x8x8xf32> -> vector<8x4x8xf32>
    %72 = vector.shape_cast %71 : vector<8x4x8xf32> to vector<8x32xf32>
    %73 = arith.truncf %72 : vector<8x32xf32> to vector<8x32xbf16>
    %c0_34 = arith.constant 0 : index
    %c0_35 = arith.constant 0 : index
    %74 = vector.load %arg10[%c0_34, %c0_35] : memref<32x32xbf16, #tpu.memory_space<vmem>>, vector<32x32xbf16>
    %cst_36 = arith.constant dense<0.000000e+00> : vector<8x32xf32>
    %75 = tpu.matmul %73, %74, %cst_36 {dimension_numbers = #tpu.dot_dimension_numbers<[1], [0], [0], [1], [0, 0, 1, 1], [], []>} : vector<8x32xbf16>, vector<32x32xbf16>, vector<8x32xf32> -> vector<8x32xf32>
    %c0_37 = arith.constant 0 : index
    %c0_38 = arith.constant 0 : index
    %76 = vector.load %arg11[%c0_37, %c0_38] : memref<1x32xf32, #tpu.memory_space<vmem>>, vector<1x32xf32>
    %77 = vector.broadcast %76 : vector<1x32xf32> to vector<8x32xf32>
    %78 = arith.addf %75, %77 : vector<8x32xf32>
    %79 = arith.addf %1, %78 : vector<8x32xf32>
    %c0_39 = arith.constant 0 : index
    %c0_40 = arith.constant 0 : index
    %80 = vector.load %arg12[%c0_39, %c0_40] : memref<1x32xf32, #tpu.memory_space<vmem>>, vector<1x32xf32>
    %c0_41 = arith.constant 0 : index
    %c0_42 = arith.constant 0 : index
    %81 = vector.load %arg13[%c0_41, %c0_42] : memref<1x32xf32, #tpu.memory_space<vmem>>, vector<1x32xf32>
    %cst_43 = arith.constant dense<0.000000e+00> : vector<8xf32>
    %82 = vector.multi_reduction <add>, %79, %cst_43 [1] : vector<8x32xf32> to vector<8xf32>
    %83 = vector.shape_cast %82 : vector<8xf32> to vector<8x1xf32>
    %cst_44 = arith.constant 3.200000e+01 : f32
    %84 = vector.broadcast %cst_44 : f32 to vector<8x1xf32>
    %85 = arith.divf %83, %84 : vector<8x1xf32>
    %86 = vector.broadcast %85 : vector<8x1xf32> to vector<8x32xf32>
    %87 = arith.subf %79, %86 : vector<8x32xf32>
    %88 = vector.broadcast %85 : vector<8x1xf32> to vector<8x32xf32>
    %89 = arith.subf %79, %88 : vector<8x32xf32>
    %90 = arith.mulf %87, %89 : vector<8x32xf32>
    %cst_45 = arith.constant dense<0.000000e+00> : vector<8xf32>
    %91 = vector.multi_reduction <add>, %90, %cst_45 [1] : vector<8x32xf32> to vector<8xf32>
    %92 = vector.shape_cast %91 : vector<8xf32> to vector<8x1xf32>
    %cst_46 = arith.constant 3.200000e+01 : f32
    %93 = vector.broadcast %cst_46 : f32 to vector<8x1xf32>
    %94 = arith.divf %92, %93 : vector<8x1xf32>
    %95 = vector.broadcast %85 : vector<8x1xf32> to vector<8x32xf32>
    %96 = arith.subf %79, %95 : vector<8x32xf32>
    %cst_47 = arith.constant 9.99999997E-7 : f32
    %97 = vector.broadcast %cst_47 : f32 to vector<8x1xf32>
    %98 = arith.addf %94, %97 : vector<8x1xf32>
    %99 = math.rsqrt %98 : vector<8x1xf32>
    %100 = vector.broadcast %99 : vector<8x1xf32> to vector<8x32xf32>
    %101 = arith.mulf %96, %100 : vector<8x32xf32>
    %102 = vector.broadcast %80 : vector<1x32xf32> to vector<8x32xf32>
    %103 = arith.mulf %101, %102 : vector<8x32xf32>
    %104 = vector.broadcast %81 : vector<1x32xf32> to vector<8x32xf32>
    %105 = arith.addf %103, %104 : vector<8x32xf32>
    %106 = arith.truncf %105 : vector<8x32xf32> to vector<8x32xbf16>
    %c0_48 = arith.constant 0 : index
    %c0_49 = arith.constant 0 : index
    %107 = vector.load %arg14[%c0_48, %c0_49] : memref<32x64xbf16, #tpu.memory_space<vmem>>, vector<32x64xbf16>
    %cst_50 = arith.constant dense<0.000000e+00> : vector<8x64xf32>
    %108 = tpu.matmul %106, %107, %cst_50 {dimension_numbers = #tpu.dot_dimension_numbers<[1], [0], [0], [1], [0, 0, 1, 1], [], []>} : vector<8x32xbf16>, vector<32x64xbf16>, vector<8x64xf32> -> vector<8x64xf32>
    %c0_51 = arith.constant 0 : index
    %c0_52 = arith.constant 0 : index
    %109 = vector.load %arg15[%c0_51, %c0_52] : memref<1x64xf32, #tpu.memory_space<vmem>>, vector<1x64xf32>
    %110 = vector.broadcast %109 : vector<1x64xf32> to vector<8x64xf32>
    %111 = arith.addf %108, %110 : vector<8x64xf32>
    %cst_53 = arith.constant 5.000000e-01 : f32
    %112 = vector.broadcast %cst_53 : f32 to vector<8x64xf32>
    %113 = arith.mulf %112, %111 : vector<8x64xf32>
    %cst_54 = arith.constant 0.707106769 : f32
    %114 = vector.broadcast %cst_54 : f32 to vector<8x64xf32>
    %115 = arith.mulf %111, %114 : vector<8x64xf32>
    %cst_55 = arith.constant 0.000000e+00 : f32
    %116 = vector.broadcast %cst_55 : f32 to vector<8x64xf32>
    %117 = arith.cmpf oge, %115, %116 : vector<8x64xf32>
    %cst_56 = arith.constant 1.000000e+00 : f32
    %cst_57 = arith.constant -1.000000e+00 : f32
    %118 = vector.broadcast %cst_56 : f32 to vector<8x64xf32>
    %119 = vector.broadcast %cst_57 : f32 to vector<8x64xf32>
    %120 = arith.select %117, %118, %119 : vector<8x64xi1>, vector<8x64xf32>
    %121 = math.absf %115 : vector<8x64xf32>
    %cst_58 = arith.constant 0.327591091 : f32
    %122 = vector.broadcast %cst_58 : f32 to vector<8x64xf32>
    %123 = arith.mulf %122, %121 : vector<8x64xf32>
    %cst_59 = arith.constant 1.000000e+00 : f32
    %124 = vector.broadcast %cst_59 : f32 to vector<8x64xf32>
    %125 = arith.addf %124, %123 : vector<8x64xf32>
    %126 = tpu.reciprocal %125 : vector<8x64xf32> -> vector<8x64xf32>
    %cst_60 = arith.constant 1.06140542 : f32
    %127 = vector.broadcast %cst_60 : f32 to vector<8x64xf32>
    %128 = arith.mulf %126, %127 : vector<8x64xf32>
    %cst_61 = arith.constant -1.45315206 : f32
    %129 = vector.broadcast %cst_61 : f32 to vector<8x64xf32>
    %130 = arith.addf %129, %128 : vector<8x64xf32>
    %131 = arith.mulf %126, %130 : vector<8x64xf32>
    %cst_62 = arith.constant 1.42141378 : f32
    %132 = vector.broadcast %cst_62 : f32 to vector<8x64xf32>
    %133 = arith.addf %132, %131 : vector<8x64xf32>
    %134 = arith.mulf %126, %133 : vector<8x64xf32>
    %cst_63 = arith.constant -0.284496725 : f32
    %135 = vector.broadcast %cst_63 : f32 to vector<8x64xf32>
    %136 = arith.addf %135, %134 : vector<8x64xf32>
    %137 = arith.mulf %126, %136 : vector<8x64xf32>
    %cst_64 = arith.constant 0.254829586 : f32
    %138 = vector.broadcast %cst_64 : f32 to vector<8x64xf32>
    %139 = arith.addf %138, %137 : vector<8x64xf32>
    %140 = arith.mulf %126, %139 : vector<8x64xf32>
    %cst_65 = arith.constant 0.000000e+00 : f32
    %141 = vector.broadcast %cst_65 : f32 to vector<8x64xf32>
    %142 = arith.subf %141, %121 : vector<8x64xf32>
    %143 = arith.mulf %142, %121 : vector<8x64xf32>
    %144 = math.exp %143 : vector<8x64xf32>
    %145 = arith.mulf %140, %144 : vector<8x64xf32>
    %cst_66 = arith.constant 1.000000e+00 : f32
    %146 = vector.broadcast %cst_66 : f32 to vector<8x64xf32>
    %147 = arith.subf %146, %145 : vector<8x64xf32>
    %148 = arith.mulf %120, %147 : vector<8x64xf32>
    %cst_67 = arith.constant 1.000000e+00 : f32
    %149 = vector.broadcast %cst_67 : f32 to vector<8x64xf32>
    %150 = arith.addf %149, %148 : vector<8x64xf32>
    %151 = arith.mulf %113, %150 : vector<8x64xf32>
    %152 = arith.truncf %151 : vector<8x64xf32> to vector<8x64xbf16>
    %c0_68 = arith.constant 0 : index
    %c0_69 = arith.constant 0 : index
    %153 = vector.load %arg16[%c0_68, %c0_69] : memref<64x32xbf16, #tpu.memory_space<vmem>>, vector<64x32xbf16>
    %cst_70 = arith.constant dense<0.000000e+00> : vector<8x32xf32>
    %154 = tpu.matmul %152, %153, %cst_70 {dimension_numbers = #tpu.dot_dimension_numbers<[1], [0], [0], [1], [0, 0, 1, 1], [], []>} : vector<8x64xbf16>, vector<64x32xbf16>, vector<8x32xf32> -> vector<8x32xf32>
    %c0_71 = arith.constant 0 : index
    %c0_72 = arith.constant 0 : index
    %155 = vector.load %arg17[%c0_71, %c0_72] : memref<1x32xf32, #tpu.memory_space<vmem>>, vector<1x32xf32>
    %156 = vector.broadcast %155 : vector<1x32xf32> to vector<8x32xf32>
    %157 = arith.addf %154, %156 : vector<8x32xf32>
    %158 = arith.addf %79, %157 : vector<8x32xf32>
    %c0_73 = arith.constant 0 : index
    %c0_74 = arith.constant 0 : index
    %c0_75 = arith.constant 0 : index
    %159 = vector.load %arg20[%c0_73, %c0_74, %c0_75] : memref<1x8x32xf32, #tpu.memory_space<vmem>>, vector<1x8x32xf32>
    %160 = vector.shape_cast %159 : vector<1x8x32xf32> to vector<8x32xf32>
    %161 = vector.shape_cast %158 : vector<8x32xf32> to vector<1x8x32xf32>
    tpu.vector_store %arg20[%c0_73, %c0_74, %c0_75], %161 {strides = array<i32>} : memref<1x8x32xf32, #tpu.memory_space<vmem>>, vector<1x8x32xf32>,
    return
  }
  func.func @transform_0(%arg0: i32) -> (i32, i32, i32) {
    %c0_i32 = arith.constant 0 : i32
    %c0_i32_0 = arith.constant 0 : i32
    %c0_i32_1 = arith.constant 0 : i32
    return %arg0, %c0_i32, %c0_i32_0 : i32, i32, i32
  }
  func.func @transform_1(%arg0: i32) -> (i32, i32) {
    %c0_i32 = arith.constant 0 : i32
    %c0_i32_0 = arith.constant 0 : i32
    %c0_i32_1 = arith.constant 0 : i32
    return %c0_i32, %c0_i32_0 : i32, i32
  }
  func.func @transform_2(%arg0: i32) -> (i32, i32) {
    %c0_i32 = arith.constant 0 : i32
    %c0_i32_0 = arith.constant 0 : i32
    %c0_i32_1 = arith.constant 0 : i32
    return %c0_i32, %c0_i32_0 : i32, i32
  }
  func.func @transform_3(%arg0: i32) -> (i32, i32) {
    %c0_i32 = arith.constant 0 : i32
    %c0_i32_0 = arith.constant 0 : i32
    %c0_i32_1 = arith.constant 0 : i32
    return %c0_i32, %c0_i32_0 : i32, i32
  }
  func.func @transform_4(%arg0: i32) -> (i32, i32) {
    %c0_i32 = arith.constant 0 : i32
    %c0_i32_0 = arith.constant 0 : i32
    %c0_i32_1 = arith.constant 0 : i32
    return %c0_i32, %c0_i32_0 : i32, i32
  }
  func.func @transform_5(%arg0: i32) -> (i32, i32) {
    %c0_i32 = arith.constant 0 : i32
    %c0_i32_0 = arith.constant 0 : i32
    %c0_i32_1 = arith.constant 0 : i32
    return %c0_i32, %c0_i32_0 : i32, i32
  }
  func.func @transform_6(%arg0: i32) -> (i32, i32) {
    %c0_i32 = arith.constant 0 : i32
    %c0_i32_0 = arith.constant 0 : i32
    %c0_i32_1 = arith.constant 0 : i32
    return %c0_i32, %c0_i32_0 : i32, i32
  }
  func.func @transform_7(%arg0: i32) -> (i32, i32) {
    %c0_i32 = arith.constant 0 : i32
    %c0_i32_0 = arith.constant 0 : i32
    %c0_i32_1 = arith.constant 0 : i32
    return %c0_i32, %c0_i32_0 : i32, i32
  }
  func.func @transform_8(%arg0: i32) -> (i32, i32) {
    %c0_i32 = arith.constant 0 : i32
    %c0_i32_0 = arith.constant 0 : i32
    %c0_i32_1 = arith.constant 0 : i32
    return %c0_i32, %c0_i32_0 : i32, i32
  }
  func.func @transform_9(%arg0: i32) -> (i32, i32) {
    %c0_i32 = arith.constant 0 : i32
    %c0_i32_0 = arith.constant 0 : i32
    %c0_i32_1 = arith.constant 0 : i32
    return %c0_i32, %c0_i32_0 : i32, i32
  }
  func.func @transform_10(%arg0: i32) -> (i32, i32) {
    %c0_i32 = arith.constant 0 : i32
    %c0_i32_0 = arith.constant 0 : i32
    %c0_i32_1 = arith.constant 0 : i32
    return %c0_i32, %c0_i32_0 : i32, i32
  }
  func.func @transform_11(%arg0: i32) -> (i32, i32) {
    %c0_i32 = arith.constant 0 : i32
    %c0_i32_0 = arith.constant 0 : i32
    %c0_i32_1 = arith.constant 0 : i32
    return %c0_i32, %c0_i32_0 : i32, i32
  }
  func.func @transform_12(%arg0: i32) -> (i32, i32) {
    %c0_i32 = arith.constant 0 : i32
    %c0_i32_0 = arith.constant 0 : i32
    %c0_i32_1 = arith.constant 0 : i32
    return %c0_i32, %c0_i32_0 : i32, i32
  }
  func.func @transform_13(%arg0: i32) -> (i32, i32) {
    %c0_i32 = arith.constant 0 : i32
    %c0_i32_0 = arith.constant 0 : i32
    %c0_i32_1 = arith.constant 0 : i32
    return %c0_i32, %c0_i32_0 : i32, i32
  }
  func.func @transform_14(%arg0: i32) -> (i32, i32) {
    %c0_i32 = arith.constant 0 : i32
    %c0_i32_0 = arith.constant 0 : i32
    %c0_i32_1 = arith.constant 0 : i32
    return %c0_i32, %c0_i32_0 : i32, i32
  }
  func.func @transform_15(%arg0: i32) -> (i32, i32) {
    %c0_i32 = arith.constant 0 : i32
    %c0_i32_0 = arith.constant 0 : i32
    %c0_i32_1 = arith.constant 0 : i32
    return %c0_i32, %c0_i32_0 : i32, i32
  }
  func.func @transform_16(%arg0: i32) -> (i32, i32) {
    %c0_i32 = arith.constant 0 : i32
    %c0_i32_0 = arith.constant 0 : i32
    %c0_i32_1 = arith.constant 0 : i32
    return %c0_i32, %c0_i32_0 : i32, i32
  }
  func.func @transform_17(%arg0: i32) -> (i32, i32) {
    %c0_i32 = arith.constant 0 : i32
    %c0_i32_0 = arith.constant 0 : i32
    %c0_i32_1 = arith.constant 0 : i32
    return %c0_i32, %c0_i32_0 : i32, i32
  }
  func.func @transform_18(%arg0: i32) -> (i32, i32) {
    %c0_i32 = arith.constant 0 : i32
    %c0_i32_0 = arith.constant 0 : i32
    %c0_i32_1 = arith.constant 0 : i32
    return %c0_i32, %c0_i32_0 : i32, i32
  }
  func.func @transform_19(%arg0: i32) -> (i32, i32, i32) {
    %c0_i32 = arith.constant 0 : i32
    %c0_i32_0 = arith.constant 0 : i32
    %c0_i32_1 = arith.constant 0 : i32
    return %arg0, %c0_i32, %c0_i32_0 : i32, i32, i32
  }
  func.func @transform_20(%arg0: i32) -> (i32, i32, i32, i32) {
    %c0_i32 = arith.constant 0 : i32
    %c0_i32_0 = arith.constant 0 : i32
    %c0_i32_1 = arith.constant 0 : i32
    %c0_i32_2 = arith.constant 0 : i32
    return %arg0, %c0_i32, %c0_i32_0, %c0_i32_1 : i32, i32, i32, i32
  }
}

</mosaic_0001>

<llo_original>
// kernel: tpu_custom_call.1
$region0: #{tpu_custom_call.1}
  #allocation0 [shape = 'u32[]', space=smem, size = 0x4, offset = 0x4, fixed_abs, tag = 'smem constant byte address 0x4 - core index']
  #allocation1 [shape = 'u32[144,128]{1,0:T(1,128)}', space=vmem, size = 0x12000, scoped, tag = 'internal scratch']
  %s0 = inlined_call_operand.vmem [shape: f32[2,8,32], index: 0, kind: input, shape index: {}]
  %s1 = inlined_call_operand.vmem [shape: f32[1,32], index: 1, kind: input, shape index: {}]
  %s2 = inlined_call_operand.hbm [shape: f32[1,32], index: 2, kind: input, shape index: {}]
  %s3 = inlined_call_operand.vmem [shape: bf16[32,32], index: 3, kind: input, shape index: {}]
  %s4 = inlined_call_operand.hbm [shape: f32[1,32], index: 4, kind: input, shape index: {}]
  %s5 = inlined_call_operand.vmem [shape: bf16[32,32], index: 5, kind: input, shape index: {}]
  %s6 = inlined_call_operand.hbm [shape: f32[1,32], index: 6, kind: input, shape index: {}]
  %s7 = inlined_call_operand.hbm [shape: bf16[32,32], index: 7, kind: input, shape index: {}]
  %s8 = inlined_call_operand.hbm [shape: f32[1,32], index: 8, kind: input, shape index: {}]
  %s9 = inlined_call_operand.vmem [shape: bf16[32,32], index: 9, kind: input, shape index: {}]
  %s10 = inlined_call_operand.hbm [shape: f32[1,32], index: 10, kind: input, shape index: {}]
  %s11 = inlined_call_operand.hbm [shape: f32[1,32], index: 11, kind: input, shape index: {}]
  %s12 = inlined_call_operand.hbm [shape: f32[1,32], index: 12, kind: input, shape index: {}]
  %s13 = inlined_call_operand.vmem [shape: bf16[32,64], index: 13, kind: input, shape index: {}]
  %s14 = inlined_call_operand.vmem [shape: f32[1,64], index: 14, kind: input, shape index: {}]
  %s15 = inlined_call_operand.vmem [shape: bf16[64,32], index: 15, kind: input, shape index: {}]
  %s16 = inlined_call_operand.vmem [shape: f32[1,32], index: 16, kind: input, shape index: {}]
  %s17 = inlined_call_operand.vmem [shape: f32[1,32], index: 17, kind: input, shape index: {}]
  %s18 = inlined_call_operand.vmem [shape: f32[1,32], index: 18, kind: input, shape index: {}]
  %s19 = inlined_call_operand.hbm [shape: f32[2,8,32], index: 19, kind: output, shape index: {0}]
  %s20 = inlined_call_operand.hbm [shape: f32[2,4,8,8], index: 20, kind: output, shape index: {1}]
  %21 = xla_tuple %s19, %s20
  %s22 = sld [smem:[#allocation0]]
  $region149: #{tpu_custom_call.1} parent=0
    _
  %s24 = ssub.s32 1, %s22
  %s25 = scalar_select 0, %s24, %s22
  $region1: #{tpu_custom_call.1} parent=0
    #allocation2 [shape = 'u8[512]{0}', space=vmem, size = 0x400, scoped, tag = 'input window, operand 2, single buffered']
    #allocation3 [shape = 's32[2]{0}', space=sflag, size = 0x8, scoped, tag = 'scoped memory for tpu_custom_call.1']
    #allocation4 [shape = 's32[2]{0}', space=sflag, size = 0x8, scoped, tag = 'scoped memory for tpu_custom_call.1']
    #allocation5 [shape = 'u8[512]{0}', space=vmem, size = 0x400, scoped, tag = 'input window, operand 4, single buffered']
    #allocation6 [shape = 's32[1]{0}', space=sflag, size = 0x4, scoped, tag = 'scoped memory for tpu_custom_call.1']
    #allocation7 [shape = 'u8[512]{0}', space=vmem, size = 0x400, scoped, tag = 'input window, operand 6, single buffered']
    #allocation8 [shape = 'u8[8192]{0}', space=vmem, size = 0x2000, scoped, tag = 'input window, operand 7, single buffered']
    #allocation9 [shape = 's32[1]{0}', space=sflag, size = 0x4, scoped, tag = 'scoped memory for tpu_custom_call.1']
    #allocation10 [shape = 'u8[512]{0}', space=vmem, size = 0x400, scoped, tag = 'input window, operand 8, single buffered']
    #allocation11 [shape = 'u8[512]{0}', space=vmem, size = 0x400, scoped, tag = 'input window, operand 10, single buffered']
    #allocation12 [shape = 's32[1]{0}', space=sflag, size = 0x4, scoped, tag = 'scoped memory for tpu_custom_call.1']
    #allocation13 [shape = 'u8[512]{0}', space=vmem, size = 0x400, scoped, tag = 'input window, operand 11, single buffered']
    #allocation14 [shape = 'u8[512]{0}', space=vmem, size = 0x400, scoped, tag = 'input window, operand 12, single buffered']
    #allocation15 [shape = 's32[1]{0}', space=sflag, size = 0x4, scoped, tag = 'scoped memory for tpu_custom_call.1']
    #allocation16 [shape = 'u8[8192]{0}', space=vmem, size = 0x2000, scoped, tag = 'output window, operand 0']
    #allocation17 [shape = 'u8[32768]{0}', space=vmem, size = 0x8000, scoped, tag = 'output window, operand 1']
    #allocation18 [shape = 's32[2]{0}', space=sflag, size = 0x8, scoped, tag = 'scoped memory for tpu_custom_call.1']
    %26 = vsyncpa [#allocation3], 0
    %27 = vsyncpa [#allocation6], 0
    %28 = vsyncpa [#allocation9], 0
    %29 = vsyncpa [#allocation12], 0
    %30 = vsyncpa [#allocation15], 0
    %31 = vsyncpa [#allocation4], 0
    %s32 = scalar_lea.sflag [#allocation4], 1
    %33 = vsyncpa %s32, 0
    %34 = vsyncpa [#allocation18], 0
    %s35 = scalar_lea.sflag [#allocation18], 1
    %36 = vsyncpa %s35, 0
    loop: start=0, step=1, limit=4
    $region2: #{tpu_custom_call.1} parent=1 // loop_pre_header
      _
    $region3: #{tpu_custom_call.1} parent=1 // loop_header
      %s38 = sphi 0, %s42
      %p39 = scmp.ge.s32.totalorder %s38, 4
      %s48 = sphi 0, %s50
      %s51 = sphi 0, %s48
      %s52 = sphi 0, %s51
      %s68 = sphi 0, %s52
      %s72 = sphi 0, %s72
      %s74 = sphi 0, %s72
      %s75 = sphi 0, %s74
      %s89 = sphi 0, %s75
      %s93 = sphi 0, %s93
      %s95 = sphi 0, %s93
      %s96 = sphi 0, %s95
      %s110 = sphi 0, %s96
      %s114 = sphi 0, %s114
      %s116 = sphi 0, %s114
      %s117 = sphi 0, %s116
      %s131 = sphi 0, %s117
      %s135 = sphi 0, %s135
      %s137 = sphi 0, %s135
      %s138 = sphi 0, %s137
      %s152 = sphi 0, %s138
      %s156 = sphi 0, %s156
      %s158 = sphi 0, %s156
      %s159 = sphi 0, %s158
      %s173 = sphi 0, %s159
      %s177 = sphi 0, %s177
      %s179 = sphi 0, %s177
      %s180 = sphi 0, %s179
      %s194 = sphi 0, %s180
      %s198 = sphi 0, %s198
      %s200 = sphi 0, %s198
      %s201 = sphi 0, %s200
      %s215 = sphi 0, %s201
      %s219 = sphi 0, %s219
      %s221 = sphi 0, %s219
      %s222 = sphi 0, %s221
      %s236 = sphi 0, %s222
      %s240 = sphi 0, %s240
      %s242 = sphi 0, %s240
      %s243 = sphi 0, %s242
      %s257 = sphi 0, %s243
      %s261 = sphi 0, %s261
      %s263 = sphi 0, %s261
      %s264 = sphi 0, %s263
      %s278 = sphi 0, %s264
      %s282 = sphi 0, %s282
      %s284 = sphi 0, %s282
      %s285 = sphi 0, %s284
      %s299 = sphi 0, %s285
      %s303 = sphi 0, %s303
      %s305 = sphi 0, %s303
      %s306 = sphi 0, %s305
      %s320 = sphi 0, %s306
      %s324 = sphi 0, %s324
      %s326 = sphi 0, %s324
      %s327 = sphi 0, %s326
      %s341 = sphi 0, %s327
      %s345 = sphi 0, %s345
      %s347 = sphi 0, %s345
      %s348 = sphi 0, %s347
      %s362 = sphi 0, %s348
      %s366 = sphi 0, %s366
      %s368 = sphi 0, %s366
      %s369 = sphi 0, %s368
      %s383 = sphi 0, %s369
      %s387 = sphi 0, %s387
      %s389 = sphi 0, %s387
      %s390 = sphi 0, %s389
      %s404 = sphi 0, %s390
      %s408 = sphi 0, %s408
      %s410 = sphi 0, %s408
      %s411 = sphi 0, %s410
      %s425 = sphi 0, %s411
      %s429 = sphi 0, %s429
      %s431 = sphi 0, %s429
      %s432 = sphi 0, %s431
      %s446 = sphi 0, %s432
      %s452 = sphi 0, %s454
      %s455 = sphi 0, %s452
      %s456 = sphi 0, %s455
      %s472 = sphi 0, %s456
      %s478 = sphi 0, %s480
      %s481 = sphi 0, %s478
      %s482 = sphi 0, %s481
      %s498 = sphi 0, %s482
    $region4: #{tpu_custom_call.1} parent=1 // loop_header_branch
      %41 = sbr.rel (%p39) target = $region8
    $region5: #{tpu_custom_call.1} parent=1 // loop_body
      %s43 = ssub.s32 %s38, 1
      %s44 = ssub.s32 %s38, 2
      %s45 = sadd.s32 %s38, 1
      %s46 = ssub.s32 %s38, %s45
      %p47 = scmp.eq.s32.totalorder %s46, 0
      %s49 = sadd.s32 %s48, 1
      %s50 = scalar_select %p47, %s48, %s49
      %p53 = pneg %p47
      %p54 = scmp.eq.s32.totalorder %s38, 1
      %p55 = por %p53, %p54
      %p56 = scmp.ne.s32.totalorder %s48, %s51
      %p57 = scmp.eq.s32.totalorder %s38, 0
      %p58 = por %p56, %p57
      %p59 = scmp.ne.s32.totalorder %s48, %s51
      %p60 = scmp.eq.s32.totalorder %s43, 1
      %p61 = por %p59, %p60
      %p62 = scmp.ne.s32.totalorder %s51, %s52
      %p63 = scmp.eq.s32.totalorder %s43, 0
      %p64 = por %p62, %p63
      %p65 = scmp.ne.s32.totalorder %s51, %s52
      %p66 = scmp.eq.s32.totalorder %s44, 1
      %p67 = por %p65, %p66
      %p69 = scmp.ne.s32.totalorder %s52, %s68
      %p70 = scmp.eq.s32.totalorder %s44, 0
      %p71 = por %p69, %p70
      %s73 = sadd.s32 %s72, 1
      %p76 = scmp.eq.s32.totalorder %s38, 1
      %p77 = scmp.ne.s32.totalorder %s72, %s74
      %p78 = scmp.eq.s32.totalorder %s38, 0
      %p79 = por %p77, %p78
      %p80 = scmp.ne.s32.totalorder %s72, %s74
      %p81 = scmp.eq.s32.totalorder %s43, 1
      %p82 = por %p80, %p81
      %p83 = scmp.ne.s32.totalorder %s74, %s75
      %p84 = scmp.eq.s32.totalorder %s43, 0
      %p85 = por %p83, %p84
      %p86 = scmp.ne.s32.totalorder %s74, %s75
      %p87 = scmp.eq.s32.totalorder %s44, 1
      %p88 = por %p86, %p87
      %p90 = scmp.ne.s32.totalorder %s75, %s89
      %p91 = scmp.eq.s32.totalorder %s44, 0
      %p92 = por %p90, %p91
      %s94 = sadd.s32 %s93, 1
      %p97 = scmp.eq.s32.totalorder %s38, 1
      %p98 = scmp.ne.s32.totalorder %s93, %s95
      %p99 = scmp.eq.s32.totalorder %s38, 0
      %p100 = por %p98, %p99
      %p101 = scmp.ne.s32.totalorder %s93, %s95
      %p102 = scmp.eq.s32.totalorder %s43, 1
      %p103 = por %p101, %p102
      %p104 = scmp.ne.s32.totalorder %s95, %s96
      %p105 = scmp.eq.s32.totalorder %s43, 0
      %p106 = por %p104, %p105
      %p107 = scmp.ne.s32.totalorder %s95, %s96
      %p108 = scmp.eq.s32.totalorder %s44, 1
      %p109 = por %p107, %p108
      %p111 = scmp.ne.s32.totalorder %s96, %s110
      %p112 = scmp.eq.s32.totalorder %s44, 0
      %p113 = por %p111, %p112
      %s115 = sadd.s32 %s114, 1
      %p118 = scmp.eq.s32.totalorder %s38, 1
      %p119 = scmp.ne.s32.totalorder %s114, %s116
      %p120 = scmp.eq.s32.totalorder %s38, 0
      %p121 = por %p119, %p120
      %p122 = scmp.ne.s32.totalorder %s114, %s116
      %p123 = scmp.eq.s32.totalorder %s43, 1
      %p124 = por %p122, %p123
      %p125 = scmp.ne.s32.totalorder %s116, %s117
      %p126 = scmp.eq.s32.totalorder %s43, 0
      %p127 = por %p125, %p126
      %p128 = scmp.ne.s32.totalorder %s116, %s117
      %p129 = scmp.eq.s32.totalorder %s44, 1
      %p130 = por %p128, %p129
      %p132 = scmp.ne.s32.totalorder %s117, %s131
      %p133 = scmp.eq.s32.totalorder %s44, 0
      %p134 = por %p132, %p133
      %s136 = sadd.s32 %s135, 1
      %p139 = scmp.eq.s32.totalorder %s38, 1
      %p140 = scmp.ne.s32.totalorder %s135, %s137
      %p141 = scmp.eq.s32.totalorder %s38, 0
      %p142 = por %p140, %p141
      %p143 = scmp.ne.s32.totalorder %s135, %s137
      %p144 = scmp.eq.s32.totalorder %s43, 1
      %p145 = por %p143, %p144
      %p146 = scmp.ne.s32.totalorder %s137, %s138
      %p147 = scmp.eq.s32.totalorder %s43, 0
      %p148 = por %p146, %p147
      %p149 = scmp.ne.s32.totalorder %s137, %s138
      %p150 = scmp.eq.s32.totalorder %s44, 1
      %p151 = por %p149, %p150
      %p153 = scmp.ne.s32.totalorder %s138, %s152
      %p154 = scmp.eq.s32.totalorder %s44, 0
      %p155 = por %p153, %p154
      %s157 = sadd.s32 %s156, 1
      %p160 = scmp.eq.s32.totalorder %s38, 1
      %p161 = scmp.ne.s32.totalorder %s156, %s158
      %p162 = scmp.eq.s32.totalorder %s38, 0
      %p163 = por %p161, %p162
      %p164 = scmp.ne.s32.totalorder %s156, %s158
      %p165 = scmp.eq.s32.totalorder %s43, 1
      %p166 = por %p164, %p165
      %p167 = scmp.ne.s32.totalorder %s158, %s159
      %p168 = scmp.eq.s32.totalorder %s43, 0
      %p169 = por %p167, %p168
      %p170 = scmp.ne.s32.totalorder %s158, %s159
      %p171 = scmp.eq.s32.totalorder %s44, 1
      %p172 = por %p170, %p171
      %p174 = scmp.ne.s32.totalorder %s159, %s173
      %p175 = scmp.eq.s32.totalorder %s44, 0
      %p176 = por %p174, %p175
      %s178 = sadd.s32 %s177, 1
      %p181 = scmp.eq.s32.totalorder %s38, 1
      %p182 = scmp.ne.s32.totalorder %s177, %s179
      %p183 = scmp.eq.s32.totalorder %s38, 0
      %p184 = por %p182, %p183
      %p185 = scmp.ne.s32.totalorder %s177, %s179
      %p186 = scmp.eq.s32.totalorder %s43, 1
      %p187 = por %p185, %p186
      %p188 = scmp.ne.s32.totalorder %s179, %s180
      %p189 = scmp.eq.s32.totalorder %s43, 0
      %p190 = por %p188, %p189
      %p191 = scmp.ne.s32.totalorder %s179, %s180
      %p192 = scmp.eq.s32.totalorder %s44, 1
      %p193 = por %p191, %p192
      %p195 = scmp.ne.s32.totalorder %s180, %s194
      %p196 = scmp.eq.s32.totalorder %s44, 0
      %p197 = por %p195, %p196
      %s199 = sadd.s32 %s198, 1
      %p202 = scmp.eq.s32.totalorder %s38, 1
      %p203 = scmp.ne.s32.totalorder %s198, %s200
      %p204 = scmp.eq.s32.totalorder %s38, 0
      %p205 = por %p203, %p204
      %p206 = scmp.ne.s32.totalorder %s198, %s200
      %p207 = scmp.eq.s32.totalorder %s43, 1
      %p208 = por %p206, %p207
      %p209 = scmp.ne.s32.totalorder %s200, %s201
      %p210 = scmp.eq.s32.totalorder %s43, 0
      %p211 = por %p209, %p210
      %p212 = scmp.ne.s32.totalorder %s200, %s201
      %p213 = scmp.eq.s32.totalorder %s44, 1
      %p214 = por %p212, %p213
      %p216 = scmp.ne.s32.totalorder %s201, %s215
      %p217 = scmp.eq.s32.totalorder %s44, 0
      %p218 = por %p216, %p217
      %s220 = sadd.s32 %s219, 1
      %p223 = scmp.eq.s32.totalorder %s38, 1
      %p224 = scmp.ne.s32.totalorder %s219, %s221
      %p225 = scmp.eq.s32.totalorder %s38, 0
      %p226 = por %p224, %p225
      %p227 = scmp.ne.s32.totalorder %s219, %s221
      %p228 = scmp.eq.s32.totalorder %s43, 1
      %p229 = por %p227, %p228
      %p230 = scmp.ne.s32.totalorder %s221, %s222
      %p231 = scmp.eq.s32.totalorder %s43, 0
      %p232 = por %p230, %p231
      %p233 = scmp.ne.s32.totalorder %s221, %s222
      %p234 = scmp.eq.s32.totalorder %s44, 1
      %p235 = por %p233, %p234
      %p237 = scmp.ne.s32.totalorder %s222, %s236
      %p238 = scmp.eq.s32.totalorder %s44, 0
      %p239 = por %p237, %p238
      %s241 = sadd.s32 %s240, 1
      %p244 = scmp.eq.s32.totalorder %s38, 1
      %p245 = scmp.ne.s32.totalorder %s240, %s242
      %p246 = scmp.eq.s32.totalorder %s38, 0
      %p247 = por %p245, %p246
      %p248 = scmp.ne.s32.totalorder %s240, %s242
      %p249 = scmp.eq.s32.totalorder %s43, 1
      %p250 = por %p248, %p249
      %p251 = scmp.ne.s32.totalorder %s242, %s243
      %p252 = scmp.eq.s32.totalorder %s43, 0
      %p253 = por %p251, %p252
      %p254 = scmp.ne.s32.totalorder %s242, %s243
      %p255 = scmp.eq.s32.totalorder %s44, 1
      %p256 = por %p254, %p255
      %p258 = scmp.ne.s32.totalorder %s243, %s257
      %p259 = scmp.eq.s32.totalorder %s44, 0
      %p260 = por %p258, %p259
      %s262 = sadd.s32 %s261, 1
      %p265 = scmp.eq.s32.totalorder %s38, 1
      %p266 = scmp.ne.s32.totalorder %s261, %s263
      %p267 = scmp.eq.s32.totalorder %s38, 0
      %p268 = por %p266, %p267
      %p269 = scmp.ne.s32.totalorder %s261, %s263
      %p270 = scmp.eq.s32.totalorder %s43, 1
      %p271 = por %p269, %p270
      %p272 = scmp.ne.s32.totalorder %s263, %s264
      %p273 = scmp.eq.s32.totalorder %s43, 0
      %p274 = por %p272, %p273
      %p275 = scmp.ne.s32.totalorder %s263, %s264
      %p276 = scmp.eq.s32.totalorder %s44, 1
      %p277 = por %p275, %p276
      %p279 = scmp.ne.s32.totalorder %s264, %s278
      %p280 = scmp.eq.s32.totalorder %s44, 0
      %p281 = por %p279, %p280
      %s283 = sadd.s32 %s282, 1
      %p286 = scmp.eq.s32.totalorder %s38, 1
      %p287 = scmp.ne.s32.totalorder %s282, %s284
      %p288 = scmp.eq.s32.totalorder %s38, 0
      %p289 = por %p287, %p288
      %p290 = scmp.ne.s32.totalorder %s282, %s284
      %p291 = scmp.eq.s32.totalorder %s43, 1
      %p292 = por %p290, %p291
      %p293 = scmp.ne.s32.totalorder %s284, %s285
      %p294 = scmp.eq.s32.totalorder %s43, 0
      %p295 = por %p293, %p294
      %p296 = scmp.ne.s32.totalorder %s284, %s285
      %p297 = scmp.eq.s32.totalorder %s44, 1
      %p298 = por %p296, %p297
      %p300 = scmp.ne.s32.totalorder %s285, %s299
      %p301 = scmp.eq.s32.totalorder %s44, 0
      %p302 = por %p300, %p301
      %s304 = sadd.s32 %s303, 1
      %p307 = scmp.eq.s32.totalorder %s38, 1
      %p308 = scmp.ne.s32.totalorder %s303, %s305
      %p309 = scmp.eq.s32.totalorder %s38, 0
      %p310 = por %p308, %p309
      %p311 = scmp.ne.s32.totalorder %s303, %s305
      %p312 = scmp.eq.s32.totalorder %s43, 1
      %p313 = por %p311, %p312
      %p314 = scmp.ne.s32.totalorder %s305, %s306
      %p315 = scmp.eq.s32.totalorder %s43, 0
      %p316 = por %p314, %p315
      %p317 = scmp.ne.s32.totalorder %s305, %s306
      %p318 = scmp.eq.s32.totalorder %s44, 1
      %p319 = por %p317, %p318
      %p321 = scmp.ne.s32.totalorder %s306, %s320
      %p322 = scmp.eq.s32.totalorder %s44, 0
      %p323 = por %p321, %p322
      %s325 = sadd.s32 %s324, 1
      %p328 = scmp.eq.s32.totalorder %s38, 1
      %p329 = scmp.ne.s32.totalorder %s324, %s326
      %p330 = scmp.eq.s32.totalorder %s38, 0
      %p331 = por %p329, %p330
      %p332 = scmp.ne.s32.totalorder %s324, %s326
      %p333 = scmp.eq.s32.totalorder %s43, 1
      %p334 = por %p332, %p333
      %p335 = scmp.ne.s32.totalorder %s326, %s327
      %p336 = scmp.eq.s32.totalorder %s43, 0
      %p337 = por %p335, %p336
      %p338 = scmp.ne.s32.totalorder %s326, %s327
      %p339 = scmp.eq.s32.totalorder %s44, 1
      %p340 = por %p338, %p339
      %p342 = scmp.ne.s32.totalorder %s327, %s341
      %p343 = scmp.eq.s32.totalorder %s44, 0
      %p344 = por %p342, %p343
      %s346 = sadd.s32 %s345, 1
      %p349 = scmp.eq.s32.totalorder %s38, 1
      %p350 = scmp.ne.s32.totalorder %s345, %s347
      %p351 = scmp.eq.s32.totalorder %s38, 0
      %p352 = por %p350, %p351
      %p353 = scmp.ne.s32.totalorder %s345, %s347
      %p354 = scmp.eq.s32.totalorder %s43, 1
      %p355 = por %p353, %p354
      %p356 = scmp.ne.s32.totalorder %s347, %s348
      %p357 = scmp.eq.s32.totalorder %s43, 0
      %p358 = por %p356, %p357
      %p359 = scmp.ne.s32.totalorder %s347, %s348
      %p360 = scmp.eq.s32.totalorder %s44, 1
      %p361 = por %p359, %p360
      %p363 = scmp.ne.s32.totalorder %s348, %s362
      %p364 = scmp.eq.s32.totalorder %s44, 0
      %p365 = por %p363, %p364
      %s367 = sadd.s32 %s366, 1
      %p370 = scmp.eq.s32.totalorder %s38, 1
      %p371 = scmp.ne.s32.totalorder %s366, %s368
      %p372 = scmp.eq.s32.totalorder %s38, 0
      %p373 = por %p371, %p372
      %p374 = scmp.ne.s32.totalorder %s366, %s368
      %p375 = scmp.eq.s32.totalorder %s43, 1
      %p376 = por %p374, %p375
      %p377 = scmp.ne.s32.totalorder %s368, %s369
      %p378 = scmp.eq.s32.totalorder %s43, 0
      %p379 = por %p377, %p378
      %p380 = scmp.ne.s32.totalorder %s368, %s369
      %p381 = scmp.eq.s32.totalorder %s44, 1
      %p382 = por %p380, %p381
      %p384 = scmp.ne.s32.totalorder %s369, %s383
      %p385 = scmp.eq.s32.totalorder %s44, 0
      %p386 = por %p384, %p385
      %s388 = sadd.s32 %s387, 1
      %p391 = scmp.eq.s32.totalorder %s38, 1
      %p392 = scmp.ne.s32.totalorder %s387, %s389
      %p393 = scmp.eq.s32.totalorder %s38, 0
      %p394 = por %p392, %p393
      %p395 = scmp.ne.s32.totalorder %s387, %s389
      %p396 = scmp.eq.s32.totalorder %s43, 1
      %p397 = por %p395, %p396
      %p398 = scmp.ne.s32.totalorder %s389, %s390
      %p399 = scmp.eq.s32.totalorder %s43, 0
      %p400 = por %p398, %p399
      %p401 = scmp.ne.s32.totalorder %s389, %s390
      %p402 = scmp.eq.s32.totalorder %s44, 1
      %p403 = por %p401, %p402
      %p405 = scmp.ne.s32.totalorder %s390, %s404
      %p406 = scmp.eq.s32.totalorder %s44, 0
      %p407 = por %p405, %p406
      %s409 = sadd.s32 %s408, 1
      %p412 = scmp.eq.s32.totalorder %s38, 1
      %p413 = scmp.ne.s32.totalorder %s408, %s410
      %p414 = scmp.eq.s32.totalorder %s38, 0
      %p415 = por %p413, %p414
      %p416 = scmp.ne.s32.totalorder %s408, %s410
      %p417 = scmp.eq.s32.totalorder %s43, 1
      %p418 = por %p416, %p417
      %p419 = scmp.ne.s32.totalorder %s410, %s411
      %p420 = scmp.eq.s32.totalorder %s43, 0
      %p421 = por %p419, %p420
      %p422 = scmp.ne.s32.totalorder %s410, %s411
      %p423 = scmp.eq.s32.totalorder %s44, 1
      %p424 = por %p422, %p423
      %p426 = scmp.ne.s32.totalorder %s411, %s425
      %p427 = scmp.eq.s32.totalorder %s44, 0
      %p428 = por %p426, %p427
      %s430 = sadd.s32 %s429, 1
      %p433 = scmp.eq.s32.totalorder %s38, 1
      %p434 = scmp.ne.s32.totalorder %s429, %s431
      %p435 = scmp.eq.s32.totalorder %s38, 0
      %p436 = por %p434, %p435
      %p437 = scmp.ne.s32.totalorder %s429, %s431
      %p438 = scmp.eq.s32.totalorder %s43, 1
      %p439 = por %p437, %p438
      %p440 = scmp.ne.s32.totalorder %s431, %s432
      %p441 = scmp.eq.s32.totalorder %s43, 0
      %p442 = por %p440, %p441
      %p443 = scmp.ne.s32.totalorder %s431, %s432
      %p444 = scmp.eq.s32.totalorder %s44, 1
      %p445 = por %p443, %p444
      %p447 = scmp.ne.s32.totalorder %s432, %s446
      %p448 = scmp.eq.s32.totalorder %s44, 0
      %p449 = por %p447, %p448
      %s450 = ssub.s32 %s38, %s45
      %p451 = scmp.eq.s32.totalorder %s450, 0
      %s453 = sadd.s32 %s452, 1
      %s454 = scalar_select %p451, %s452, %s453
      %p457 = pneg %p451
      %p458 = scmp.eq.s32.totalorder %s38, 1
      %p459 = por %p457, %p458
      %p460 = scmp.ne.s32.totalorder %s452, %s455
      %p461 = scmp.eq.s32.totalorder %s38, 0
      %p462 = por %p460, %p461
      %p463 = scmp.ne.s32.totalorder %s452, %s455
      %p464 = scmp.eq.s32.totalorder %s43, 1
      %p465 = por %p463, %p464
      %p466 = scmp.ne.s32.totalorder %s455, %s456
      %p467 = scmp.eq.s32.totalorder %s43, 0
      %p468 = por %p466, %p467
      %p469 = scmp.ne.s32.totalorder %s455, %s456
      %p470 = scmp.eq.s32.totalorder %s44, 1
      %p471 = por %p469, %p470
      %p473 = scmp.ne.s32.totalorder %s456, %s472
      %p474 = scmp.eq.s32.totalorder %s44, 0
      %p475 = por %p473, %p474
      %s476 = ssub.s32 %s38, %s45
      %p477 = scmp.eq.s32.totalorder %s476, 0
      %s479 = sadd.s32 %s478, 1
      %s480 = scalar_select %p477, %s478, %s479
      %p483 = pneg %p477
      %p484 = scmp.eq.s32.totalorder %s38, 1
      %p485 = por %p483, %p484
      %p486 = scmp.ne.s32.totalorder %s478, %s481
      %p487 = scmp.eq.s32.totalorder %s38, 0
      %p488 = por %p486, %p487
      %p489 = scmp.ne.s32.totalorder %s478, %s481
      %p490 = scmp.eq.s32.totalorder %s43, 1
      %p491 = por %p489, %p490
      %p492 = scmp.ne.s32.totalorder %s481, %s482
      %p493 = scmp.eq.s32.totalorder %s43, 0
      %p494 = por %p492, %p493
      %p495 = scmp.ne.s32.totalorder %s481, %s482
      %p496 = scmp.eq.s32.totalorder %s44, 1
      %p497 = por %p495, %p496
      %p499 = scmp.ne.s32.totalorder %s482, %s498
      %p500 = scmp.eq.s32.totalorder %s44, 0
      %p501 = por %p499, %p500
      %p502 = scmp.le.s32.totalorder 1, %s38
      %p503 = scmp.lt.s32.totalorder %s38, 3
      %p504 = pnand %p502, %p503
      %p505 = pneg %p504
      // Predicated region
      $region9: #{tpu_custom_call.1} parent=5 // pred_check
        _
      $region10: #{tpu_custom_call.1} parent=5 // pred_check_branch
        %507 = sbr.rel (%p504) target = $region12
      $region11: #{tpu_custom_call.1} parent=5 // pred_region
        %s508 = ssub.s32 %s38, 1
        // Predicated region
        $region13: #{tpu_custom_call.1} parent=11 // pred_check
          %p509 = pneg %p85
        $region14: #{tpu_custom_call.1} parent=11 // pred_check_branch
          %511 = sbr.rel (%p509) target = $region16
        $region15: #{tpu_custom_call.1} parent=11 // pred_region
          _
        $region16: #{tpu_custom_call.1} parent=11 // pred_fallthru
          _
        // Predicated region
        $region17: #{tpu_custom_call.1} parent=11 // pred_check
          %p512 = pneg %p106
        $region18: #{tpu_custom_call.1} parent=11 // pred_check_branch
          %514 = sbr.rel (%p512) target = $region20
        $region19: #{tpu_custom_call.1} parent=11 // pred_region
          %s516 = ssub.s32 16, 16
          %517 = vsyncadd [#allocation3], %s516
          %s519 = sshll.u32 [#allocation2], 4
          %s520 = int_to_ptr.vmem [resolvable:$true] %s519
          %522 = dma.hbm_to_vmem [thread:$0]  %s2, 16, %s520, [#allocation3]
        $region20: #{tpu_custom_call.1} parent=11 // pred_fallthru
          _
        // Predicated region
        $region21: #{tpu_custom_call.1} parent=11 // pred_check
          %p523 = pneg %p127
        $region22: #{tpu_custom_call.1} parent=11 // pred_check_branch
          %525 = sbr.rel (%p523) target = $region24
        $region23: #{tpu_custom_call.1} parent=11 // pred_region
          _
        $region24: #{tpu_custom_call.1} parent=11 // pred_fallthru
          _
        // Predicated region
        $region25: #{tpu_custom_call.1} parent=11 // pred_check
          %p526 = pneg %p148
        $region26: #{tpu_custom_call.1} parent=11 // pred_check_branch
          %528 = sbr.rel (%p526) target = $region28
        $region27: #{tpu_custom_call.1} parent=11 // pred_region
          %s530 = ssub.s32 16, 16
          %531 = vsyncadd [#allocation6], %s530
          %s533 = sshll.u32 [#allocation5], 4
          %s534 = int_to_ptr.vmem [resolvable:$true] %s533
          %536 = dma.hbm_to_vmem [thread:$0]  %s4, 16, %s534, [#allocation6]
        $region28: #{tpu_custom_call.1} parent=11 // pred_fallthru
          _
        // Predicated region
        $region29: #{tpu_custom_call.1} parent=11 // pred_check
          %p537 = pneg %p169
        $region30: #{tpu_custom_call.1} parent=11 // pred_check_branch
          %539 = sbr.rel (%p537) target = $region32
        $region31: #{tpu_custom_call.1} parent=11 // pred_region
          _
        $region32: #{tpu_custom_call.1} parent=11 // pred_fallthru
          _
        // Predicated region
        $region33: #{tpu_custom_call.1} parent=11 // pred_check
          %p540 = pneg %p190
        $region34: #{tpu_custom_call.1} parent=11 // pred_check_branch
          %542 = sbr.rel (%p540) target = $region36
        $region35: #{tpu_custom_call.1} parent=11 // pred_region
          %s544 = ssub.s32 16, 16
          %545 = vsyncadd [#allocation6], %s544
          %s547 = sshll.u32 [#allocation7], 4
          %s548 = int_to_ptr.vmem [resolvable:$true] %s547
          %550 = dma.hbm_to_vmem [thread:$0]  %s6, 16, %s548, [#allocation6]
        $region36: #{tpu_custom_call.1} parent=11 // pred_fallthru
          _
        // Predicated region
        $region37: #{tpu_custom_call.1} parent=11 // pred_check
          %p551 = pneg %p211
        $region38: #{tpu_custom_call.1} parent=11 // pred_check_branch
          %553 = sbr.rel (%p551) target = $region40
        $region39: #{tpu_custom_call.1} parent=11 // pred_region
          %s555 = ssub.s32 256, 256
          %556 = vsyncadd [#allocation9], %s555
          %s557 = sshll.u32 [#allocation8], 4
          %s558 = int_to_ptr.vmem [resolvable:$true] %s557
          %563 = dma.hbm_to_vmem [thread:$0]  %s7, 256, %s558, [#allocation9], 64, 64, 4
        $region40: #{tpu_custom_call.1} parent=11 // pred_fallthru
          _
        // Predicated region
        $region41: #{tpu_custom_call.1} parent=11 // pred_check
          %p564 = pneg %p232
        $region42: #{tpu_custom_call.1} parent=11 // pred_check_branch
          %566 = sbr.rel (%p564) target = $region44
        $region43: #{tpu_custom_call.1} parent=11 // pred_region
          %s568 = ssub.s32 16, 16
          %569 = vsyncadd [#allocation9], %s568
          %s571 = sshll.u32 [#allocation10], 4
          %s572 = int_to_ptr.vmem [resolvable:$true] %s571
          %574 = dma.hbm_to_vmem [thread:$0]  %s8, 16, %s572, [#allocation9]
        $region44: #{tpu_custom_call.1} parent=11 // pred_fallthru
          _
        // Predicated region
        $region45: #{tpu_custom_call.1} parent=11 // pred_check
          %p575 = pneg %p253
        $region46: #{tpu_custom_call.1} parent=11 // pred_check_branch
          %577 = sbr.rel (%p575) target = $region48
        $region47: #{tpu_custom_call.1} parent=11 // pred_region
          _
        $region48: #{tpu_custom_call.1} parent=11 // pred_fallthru
          _
        // Predicated region
        $region49: #{tpu_custom_call.1} parent=11 // pred_check
          %p578 = pneg %p274
        $region50: #{tpu_custom_call.1} parent=11 // pred_check_branch
          %580 = sbr.rel (%p578) target = $region52
        $region51: #{tpu_custom_call.1} parent=11 // pred_region
          %s582 = ssub.s32 16, 16
          %583 = vsyncadd [#allocation12], %s582
          %s585 = sshll.u32 [#allocation11], 4
          %s586 = int_to_ptr.vmem [resolvable:$true] %s585
          %588 = dma.hbm_to_vmem [thread:$0]  %s10, 16, %s586, [#allocation12]
        $region52: #{tpu_custom_call.1} parent=11 // pred_fallthru
          _
        // Predicated region
        $region53: #{tpu_custom_call.1} parent=11 // pred_check
          %p589 = pneg %p295
        $region54: #{tpu_custom_call.1} parent=11 // pred_check_branch
          %591 = sbr.rel (%p589) target = $region56
        $region55: #{tpu_custom_call.1} parent=11 // pred_region
          %s593 = ssub.s32 16, 16
          %594 = vsyncadd [#allocation12], %s593
          %s596 = sshll.u32 [#allocation13], 4
          %s597 = int_to_ptr.vmem [resolvable:$true] %s596
          %599 = dma.hbm_to_vmem [thread:$0]  %s11, 16, %s597, [#allocation12]
        $region56: #{tpu_custom_call.1} parent=11 // pred_fallthru
          _
        // Predicated region
        $region57: #{tpu_custom_call.1} parent=11 // pred_check
          %p600 = pneg %p316
        $region58: #{tpu_custom_call.1} parent=11 // pred_check_branch
          %602 = sbr.rel (%p600) target = $region60
        $region59: #{tpu_custom_call.1} parent=11 // pred_region
          %s604 = ssub.s32 16, 16
          %605 = vsyncadd [#allocation15], %s604
          %s607 = sshll.u32 [#allocation14], 4
          %s608 = int_to_ptr.vmem [resolvable:$true] %s607
          %610 = dma.hbm_to_vmem [thread:$0]  %s12, 16, %s608, [#allocation15]
        $region60: #{tpu_custom_call.1} parent=11 // pred_fallthru
          _
        // Predicated region
        $region61: #{tpu_custom_call.1} parent=11 // pred_check
          %p611 = pneg %p337
        $region62: #{tpu_custom_call.1} parent=11 // pred_check_branch
          %613 = sbr.rel (%p611) target = $region64
        $region63: #{tpu_custom_call.1} parent=11 // pred_region
          _
        $region64: #{tpu_custom_call.1} parent=11 // pred_fallthru
          _
        // Predicated region
        $region65: #{tpu_custom_call.1} parent=11 // pred_check
          %p614 = pneg %p358
        $region66: #{tpu_custom_call.1} parent=11 // pred_check_branch
          %616 = sbr.rel (%p614) target = $region68
        $region67: #{tpu_custom_call.1} parent=11 // pred_region
          _
        $region68: #{tpu_custom_call.1} parent=11 // pred_fallthru
          _
        // Predicated region
        $region69: #{tpu_custom_call.1} parent=11 // pred_check
          %p617 = pneg %p379
        $region70: #{tpu_custom_call.1} parent=11 // pred_check_branch
          %619 = sbr.rel (%p617) target = $region72
        $region71: #{tpu_custom_call.1} parent=11 // pred_region
          _
        $region72: #{tpu_custom_call.1} parent=11 // pred_fallthru
          _
        // Predicated region
        $region73: #{tpu_custom_call.1} parent=11 // pred_check
          %p620 = pneg %p400
        $region74: #{tpu_custom_call.1} parent=11 // pred_check_branch
          %622 = sbr.rel (%p620) target = $region76
        $region75: #{tpu_custom_call.1} parent=11 // pred_region
          _
        $region76: #{tpu_custom_call.1} parent=11 // pred_fallthru
          _
        // Predicated region
        $region77: #{tpu_custom_call.1} parent=11 // pred_check
          %p623 = pneg %p421
        $region78: #{tpu_custom_call.1} parent=11 // pred_check_branch
          %625 = sbr.rel (%p623) target = $region80
        $region79: #{tpu_custom_call.1} parent=11 // pred_region
          _
        $region80: #{tpu_custom_call.1} parent=11 // pred_fallthru
          _
        // Predicated region
        $region81: #{tpu_custom_call.1} parent=11 // pred_check
          %p626 = pneg %p442
        $region82: #{tpu_custom_call.1} parent=11 // pred_check_branch
          %628 = sbr.rel (%p626) target = $region84
        $region83: #{tpu_custom_call.1} parent=11 // pred_region
          _
        $region84: #{tpu_custom_call.1} parent=11 // pred_fallthru
          _
      $region12: #{tpu_custom_call.1} parent=5 // pred_fallthru
        _
      %p629 = scmp.lt.s32.totalorder %s38, 2
      // Predicated region
      $region85: #{tpu_custom_call.1} parent=5 // pred_check
        %p630 = pneg %p629
      $region86: #{tpu_custom_call.1} parent=5 // pred_check_branch
        %632 = sbr.rel (%p630) target = $region88
      $region87: #{tpu_custom_call.1} parent=5 // pred_region
        // Predicated region
        $region89: #{tpu_custom_call.1} parent=87 // pred_check
          %p633 = pneg %p58
        $region90: #{tpu_custom_call.1} parent=87 // pred_check_branch
          %635 = sbr.rel (%p633) target = $region92
        $region91: #{tpu_custom_call.1} parent=87 // pred_region
          %p636 = scmp.lt.s32.totalorder %s38, 1
          %s637 = scalar_select %p636, %s38, 1
          %s638 = smul.addr %s637, 8
          %s639 = scalar_lea.vmem %s0, %s638
        $region92: #{tpu_custom_call.1} parent=87 // pred_fallthru
          _
      $region88: #{tpu_custom_call.1} parent=5 // pred_fallthru
        _
      %p640 = scmp.le.s32.totalorder 1, %s38
      %p641 = scmp.lt.s32.totalorder %s38, 3
      %p642 = pnand %p640, %p641
      %p643 = pneg %p642
      // Predicated region
      $region93: #{tpu_custom_call.1} parent=5 // pred_check
        _
      $region94: #{tpu_custom_call.1} parent=5 // pred_check_branch
        %645 = sbr.rel (%p642) target = $region96
      $region95: #{tpu_custom_call.1} parent=5 // pred_region
        %s646 = ssub.s32 %s38, 1
        // Predicated region
        $region97: #{tpu_custom_call.1} parent=95 // pred_check
          %p647 = pneg %p106
        $region98: #{tpu_custom_call.1} parent=95 // pred_check_branch
          %649 = sbr.rel (%p647) target = $region100
        $region99: #{tpu_custom_call.1} parent=95 // pred_region
          %650 = dma.done [#allocation3], 16
        $region100: #{tpu_custom_call.1} parent=95 // pred_fallthru
          _
        // Predicated region
        $region101: #{tpu_custom_call.1} parent=95 // pred_check
          %p651 = pneg %p148
        $region102: #{tpu_custom_call.1} parent=95 // pred_check_branch
          %653 = sbr.rel (%p651) target = $region104
        $region103: #{tpu_custom_call.1} parent=95 // pred_region
          %654 = dma.done [#allocation6], 16
        $region104: #{tpu_custom_call.1} parent=95 // pred_fallthru
          _
        // Predicated region
        $region105: #{tpu_custom_call.1} parent=95 // pred_check
          %p655 = pneg %p190
        $region106: #{tpu_custom_call.1} parent=95 // pred_check_branch
          %657 = sbr.rel (%p655) target = $region108
        $region107: #{tpu_custom_call.1} parent=95 // pred_region
          %658 = dma.done [#allocation6], 16
        $region108: #{tpu_custom_call.1} parent=95 // pred_fallthru
          _
        // Predicated region
        $region109: #{tpu_custom_call.1} parent=95 // pred_check
          %p659 = pneg %p211
        $region110: #{tpu_custom_call.1} parent=95 // pred_check_branch
          %661 = sbr.rel (%p659) target = $region112
        $region111: #{tpu_custom_call.1} parent=95 // pred_region
          %662 = dma.done [#allocation9], 256
        $region112: #{tpu_custom_call.1} parent=95 // pred_fallthru
          _
        // Predicated region
        $region113: #{tpu_custom_call.1} parent=95 // pred_check
          %p663 = pneg %p232
        $region114: #{tpu_custom_call.1} parent=95 // pred_check_branch
          %665 = sbr.rel (%p663) target = $region116
        $region115: #{tpu_custom_call.1} parent=95 // pred_region
          %666 = dma.done [#allocation9], 16
        $region116: #{tpu_custom_call.1} parent=95 // pred_fallthru
          _
        // Predicated region
        $region117: #{tpu_custom_call.1} parent=95 // pred_check
          %p667 = pneg %p274
        $region118: #{tpu_custom_call.1} parent=95 // pred_check_branch
          %669 = sbr.rel (%p667) target = $region120
        $region119: #{tpu_custom_call.1} parent=95 // pred_region
          %670 = dma.done [#allocation12], 16
        $region120: #{tpu_custom_call.1} parent=95 // pred_fallthru
          _
        // Predicated region
        $region121: #{tpu_custom_call.1} parent=95 // pred_check
          %p671 = pneg %p295
        $region122: #{tpu_custom_call.1} parent=95 // pred_check_branch
          %673 = sbr.rel (%p671) target = $region124
        $region123: #{tpu_custom_call.1} parent=95 // pred_region
          %674 = dma.done [#allocation12], 16
        $region124: #{tpu_custom_call.1} parent=95 // pred_fallthru
          _
        // Predicated region
        $region125: #{tpu_custom_call.1} parent=95 // pred_check
          %p675 = pneg %p316
        $region126: #{tpu_custom_call.1} parent=95 // pred_check_branch
          %677 = sbr.rel (%p675) target = $region128
        $region127: #{tpu_custom_call.1} parent=95 // pred_region
          %678 = dma.done [#allocation15], 16
        $region128: #{tpu_custom_call.1} parent=95 // pred_fallthru
          _
        %p679 = scmp.lt.s32.totalorder %s43, 1
        %s680 = scalar_select %p679, %s43, 1
        %s681 = smul.addr %s680, 8
        %s682 = scalar_lea.vmem %s0, %s681
        %p683 = pneg %p64
        %p684 = pneg %p61
        %p685 = pneg %p85
        %p686 = pneg %p82
        %p687 = pneg %p106
        %p688 = pneg %p103
        %p689 = pneg %p127
        %p690 = pneg %p124
        %p691 = pneg %p148
        %p692 = pneg %p145
        %p693 = pneg %p169
        %p694 = pneg %p166
        %p695 = pneg %p190
        %p696 = pneg %p187
        %p697 = pneg %p211
        %p698 = pneg %p208
        %p699 = pneg %p232
        %p700 = pneg %p229
        %p701 = pneg %p253
        %p702 = pneg %p250
        %p703 = pneg %p274
        %p704 = pneg %p271
        %p705 = pneg %p295
        %p706 = pneg %p292
        %p707 = pneg %p316
        %p708 = pneg %p313
        %p709 = pneg %p337
        %p710 = pneg %p334
        %p711 = pneg %p358
        %p712 = pneg %p355
        %p713 = pneg %p379
        %p714 = pneg %p376
        %p715 = pneg %p400
        %p716 = pneg %p397
        %p717 = pneg %p421
        %p718 = pneg %p418
        %p719 = pneg %p442
        %p720 = pneg %p439
        %p721 = pneg %p468
        %p722 = pneg %p465
        %s723 = sand.u32 %s455, 1
        %s724 = scalar_lea.sflag [#allocation4], %s723
        %s725 = sand.u32 %s455, 1
        %s726 = smul.addr %s725, 8
        %s727 = scalar_lea.vmem [#allocation16], %s726
        %p728 = pneg %p494
        %p729 = pneg %p491
        %s730 = sand.u32 %s481, 1
        %s731 = scalar_lea.sflag [#allocation18], %s730
        %s732 = sand.u32 %s481, 1
        %s733 = smul.addr %s732, 32
        %s734 = scalar_lea.vmem [#allocation17], %s733
        %p735 = scmp.lt.s32.totalorder %s43, 1
        %s736 = scalar_select %p735, %s43, 1
        %s737 = smul.addr %s736, 8
        %s738 = scalar_lea.vmem %s0, %s737
        %v740 = vld [vmem:[%s738] sm:$0xff]
        %v741 = vld [vmem:[%s1] sm:$0x1]
        %v742 = vld [vmem:[#allocation2] sm:$0x1]
        %vm743 = vcmask 261120
        %v744 = vsel %vm743, %v740, 0.0
        %745 = vadd.xlane.f32.xlu0 %v744
        %v746 = vpop.xlane.xlu0 %745
        %v747 = vrcp.pop 32.0
        %v748 = vmul.f32 %v746, %v747
        %v749 = vsub.f32 %v740, %v748
        %v750 = vmul.f32 %v749, %v749
        %v751 = vsel %vm743, %v750, 0.0
        %752 = vadd.xlane.f32.xlu0 %v751
        %v753 = vpop.xlane.xlu0 %752
        %v754 = vmul.f32 %v753, %v747
        %v755 = vadd.f32 %v754, 1e-06
        %v756 = vrsqrt.pop %v755
        %v757 = vmul.f32 %v749, %v756
        %v759 = vlaneseq
        %v760 = vshrl.u32 %v759, 7
        %v761 = vsub.s32 0, %v760
        %v762 = vrot.slane %v741, %v761
        %v764 = vmul.f32 %v757, %v762
        %v766 = vlaneseq
        %v767 = vshrl.u32 %v766, 7
        %v768 = vsub.s32 0, %v767
        %v769 = vrot.slane %v742, %v768
        %v771 = vadd.f32 %v764, %v769
        %v772 = vpack.c.bf16 %v771, %v771
        %v773 = vld [vmem:[%s3] sm:$0xf]
        %v774 = vld [vmem:[%s3 + $0x4] sm:$0xf]
        %v775 = vld [vmem:[%s3 + $0x8] sm:$0xf]
        %v776 = vld [vmem:[%s3 + $0xc] sm:$0xf]
        %v777 = vld [vmem:[#allocation5] sm:$0x1]
        %v779 = vlaneseq
        %v780 = vshrl.u32 %v779, 7
        %v781 = vsub.s32 0, %v780
        %v782 = vrot.slane %v777, %v781
        %v788 = vunpack.c.l.b16 %v773
        %v789 = vunpack.c.l.b16 %v774
        %v790 = vunpack.c.l.b16 %v775
        %v791 = vunpack.c.l.b16 %v776
        %v792 = vpack.c.b16 %v789, %v788
        %v793 = vpack.c.b16 %v791, %v790
        %v797 = vsel %vm743, %v772, 0
        %799 = vmatprep.subr.bf16.mxu0 0
        %800 = vmatpush1.bf16.msra.mxu0 %v792
        %801 = vmatprep.subr.bf16.mxu0 0
        %802 = vmatpush1.bf16.msra.mxu0 %v793
        %803 = vmatprep.subr.bf16.mxu0 0
        %804 = vmatpush1.bf16.msra.mxu0 0
        %805 = vmatprep.subr.bf16.mxu0 0
        %806 = vmatpush1.bf16.msra.mxu0 0
        %807 = vmatprep.subr.bf16.mxu0 0
        %808 = vmatpush1.bf16.msra.mxu0 0
        %809 = vmatprep.subr.bf16.mxu0 0
        %810 = vmatpush1.bf16.msra.mxu0 0
        %811 = vmatprep.subr.bf16.mxu0 0
        %812 = vmatpush1.bf16.msra.mxu0 0
        %813 = vmatprep.subr.bf16.mxu0 0
        %814 = vmatpush1.bf16.msra.mxu0 0
        %815 = vmatprep.subr.bf16.mxu0 0
        %816 = vmatpush1.bf16.msra.mxu0 0
        %817 = vmatprep.subr.bf16.mxu0 0
        %818 = vmatpush1.bf16.msra.mxu0 0
        %819 = vmatprep.subr.bf16.mxu0 0
        %820 = vmatpush1.bf16.msra.mxu0 0
        %821 = vmatprep.subr.bf16.mxu0 0
        %822 = vmatpush1.bf16.msra.mxu0 0
        %823 = vmatprep.subr.bf16.mxu0 0
        %824 = vmatpush1.bf16.msra.mxu0 0
        %825 = vmatprep.subr.bf16.mxu0 0
        %826 = vmatpush1.bf16.msra.mxu0 0
        %827 = vmatprep.subr.bf16.mxu0 0
        %828 = vmatpush1.bf16.msra.mxu0 0
        %829 = vmatprep.subr.bf16.mxu0 0
        %830 = vmatpush1.bf16.msra.mxu0 0
        %831 = vmatprep.mubr.bf16.mxu0 0
        %832 = vmatmul.mubr.bf16.gmra.mrb[0].mxu0 %v797
        %v833 = vpop.f32.mrb[0].mxu0
        %v834 = vadd.f32 %v782, %v833
        %v835 = vpop.f32.mrb[0].mxu0
        %v836 = vpop.f32.mrb[0].mxu0
        %v837 = vpop.f32.mrb[0].mxu0
        %838 = vdwg.mxu0
        %v839 = vld [vmem:[%s5] sm:$0xf]
        %v840 = vld [vmem:[%s5 + $0x4] sm:$0xf]
        %v841 = vld [vmem:[%s5 + $0x8] sm:$0xf]
        %v842 = vld [vmem:[%s5 + $0xc] sm:$0xf]
        %v843 = vld [vmem:[#allocation7] sm:$0x1]
        %v845 = vlaneseq
        %v846 = vshrl.u32 %v845, 7
        %v847 = vsub.s32 0, %v846
        %v848 = vrot.slane %v843, %v847
        %v854 = vunpack.c.l.b16 %v839
        %v855 = vunpack.c.l.b16 %v840
        %v856 = vunpack.c.l.b16 %v841
        %v857 = vunpack.c.l.b16 %v842
        %v858 = vpack.c.b16 %v855, %v854
        %v859 = vpack.c.b16 %v857, %v856
        %862 = vmatprep.subr.bf16.mxu0 0
        %863 = vmatpush1.bf16.msra.mxu0 %v858
        %864 = vmatprep.subr.bf16.mxu0 0
        %865 = vmatpush1.bf16.msra.mxu0 %v859
        %866 = vmatprep.subr.bf16.mxu0 0
        %867 = vmatpush1.bf16.msra.mxu0 0
        %868 = vmatprep.subr.bf16.mxu0 0
        %869 = vmatpush1.bf16.msra.mxu0 0
        %870 = vmatprep.subr.bf16.mxu0 0
        %871 = vmatpush1.bf16.msra.mxu0 0
        %872 = vmatprep.subr.bf16.mxu0 0
        %873 = vmatpush1.bf16.msra.mxu0 0
        %874 = vmatprep.subr.bf16.mxu0 0
        %875 = vmatpush1.bf16.msra.mxu0 0
        %876 = vmatprep.subr.bf16.mxu0 0
        %877 = vmatpush1.bf16.msra.mxu0 0
        %878 = vmatprep.subr.bf16.mxu0 0
        %879 = vmatpush1.bf16.msra.mxu0 0
        %880 = vmatprep.subr.bf16.mxu0 0
        %881 = vmatpush1.bf16.msra.mxu0 0
        %882 = vmatprep.subr.bf16.mxu0 0
        %883 = vmatpush1.bf16.msra.mxu0 0
        %884 = vmatprep.subr.bf16.mxu0 0
        %885 = vmatpush1.bf16.msra.mxu0 0
        %886 = vmatprep.subr.bf16.mxu0 0
        %887 = vmatpush1.bf16.msra.mxu0 0
        %888 = vmatprep.subr.bf16.mxu0 0
        %889 = vmatpush1.bf16.msra.mxu0 0
        %890 = vmatprep.subr.bf16.mxu0 0
        %891 = vmatpush1.bf16.msra.mxu0 0
        %892 = vmatprep.subr.bf16.mxu0 0
        %893 = vmatpush1.bf16.msra.mxu0 0
        %894 = vmatprep.mubr.bf16.mxu0 0
        %895 = vmatmul.mubr.bf16.gmra.mrb[0].mxu0 %v797
        %v896 = vpop.f32.mrb[0].mxu0
        %v897 = vadd.f32 %v848, %v896
        %v898 = vpop.f32.mrb[0].mxu0
        %v899 = vpop.f32.mrb[0].mxu0
        %v900 = vpop.f32.mrb[0].mxu0
        %901 = vdwg.mxu0
        %v902 = vld [vmem:[#allocation8] sm:$0xf]
        %v903 = vld [vmem:[#allocation8 + $0x4] sm:$0xf]
        %v904 = vld [vmem:[#allocation8 + $0x8] sm:$0xf]
        %v905 = vld [vmem:[#allocation8 + $0xc] sm:$0xf]
        %v906 = vld [vmem:[#allocation10] sm:$0x1]
        %v908 = vlaneseq
        %v909 = vshrl.u32 %v908, 7
        %v910 = vsub.s32 0, %v909
        %v911 = vrot.slane %v906, %v910
        %v917 = vunpack.c.l.b16 %v902
        %v918 = vunpack.c.l.b16 %v903
        %v919 = vunpack.c.l.b16 %v904
        %v920 = vunpack.c.l.b16 %v905
        %v921 = vpack.c.b16 %v918, %v917
        %v922 = vpack.c.b16 %v920, %v919
        %925 = vmatprep.subr.bf16.mxu0 0
        %926 = vmatpush1.bf16.msra.mxu0 %v921
        %927 = vmatprep.subr.bf16.mxu0 0
        %928 = vmatpush1.bf16.msra.mxu0 %v922
        %929 = vmatprep.subr.bf16.mxu0 0
        %930 = vmatpush1.bf16.msra.mxu0 0
        %931 = vmatprep.subr.bf16.mxu0 0
        %932 = vmatpush1.bf16.msra.mxu0 0
        %933 = vmatprep.subr.bf16.mxu0 0
        %934 = vmatpush1.bf16.msra.mxu0 0
        %935 = vmatprep.subr.bf16.mxu0 0
        %936 = vmatpush1.bf16.msra.mxu0 0
        %937 = vmatprep.subr.bf16.mxu0 0
        %938 = vmatpush1.bf16.msra.mxu0 0
        %939 = vmatprep.subr.bf16.mxu0 0
        %940 = vmatpush1.bf16.msra.mxu0 0
        %941 = vmatprep.subr.bf16.mxu0 0
        %942 = vmatpush1.bf16.msra.mxu0 0
        %943 = vmatprep.subr.bf16.mxu0 0
        %944 = vmatpush1.bf16.msra.mxu0 0
        %945 = vmatprep.subr.bf16.mxu0 0
        %946 = vmatpush1.bf16.msra.mxu0 0
        %947 = vmatprep.subr.bf16.mxu0 0
        %948 = vmatpush1.bf16.msra.mxu0 0
        %949 = vmatprep.subr.bf16.mxu0 0
        %950 = vmatpush1.bf16.msra.mxu0 0
        %951 = vmatprep.subr.bf16.mxu0 0
        %952 = vmatpush1.bf16.msra.mxu0 0
        %953 = vmatprep.subr.bf16.mxu0 0
        %954 = vmatpush1.bf16.msra.mxu0 0
        %955 = vmatprep.subr.bf16.mxu0 0
        %956 = vmatpush1.bf16.msra.mxu0 0
        %957 = vmatprep.mubr.bf16.mxu0 0
        %958 = vmatmul.mubr.bf16.gmra.mrb[0].mxu0 %v797
        %v959 = vpop.f32.mrb[0].mxu0
        %v960 = vadd.f32 %v911, %v959
        %v961 = vpop.f32.mrb[0].mxu0
        %v962 = vpop.f32.mrb[0].mxu0
        %v963 = vpop.f32.mrb[0].mxu0
        %964 = vdwg.mxu0
        %v965 = vmul.f32 %v834, 0.35355338
        %967 = vrot.lane.b32.xlu0 %v965, 120
        %v968 = vpop.permute.xlu0 %967
        %970 = vrot.lane.b32.xlu0 %v965, 112
        %v971 = vpop.permute.xlu0 %970
        %973 = vrot.lane.b32.xlu0 %v965, 104
        %v974 = vpop.permute.xlu0 %973
        %v976 = vcombine.low %v965, %v971
        %v977 = vcombine.high %v965, %v971
        %v979 = vunpack.c.l.s4 1983009808
        %v980 = vunpack.c.0.s8 %v979
        %v981 = vlaneseq
        %v982 = vshrl.u32 %v981, 7
        %v983 = vsub.s32 %v980, %v982
        %v984 = vrot.slane %v976, %v983
        %v986 = vunpack.c.l.s4 1983009808
        %v987 = vunpack.c.0.s8 %v986
        %v988 = vlaneseq
        %v989 = vshrl.u32 %v988, 7
        %v990 = vsub.s32 %v987, %v989
        %v991 = vrot.slane %v977, %v990
        %v992 = vcombine.low %v968, %v974
        %v993 = vcombine.high %v968, %v974
        %v995 = vunpack.c.l.s4 1983009808
        %v996 = vunpack.c.0.s8 %v995
        %v997 = vlaneseq
        %v998 = vshrl.u32 %v997, 7
        %v999 = vsub.s32 %v996, %v998
        %v1000 = vrot.slane %v992, %v999
        %v1002 = vunpack.c.l.s4 1983009808
        %v1003 = vunpack.c.0.s8 %v1002
        %v1004 = vlaneseq
        %v1005 = vshrl.u32 %v1004, 7
        %v1006 = vsub.s32 %v1003, %v1005
        %v1007 = vrot.slane %v993, %v1006
        %v1008 = vcombine.low %v984, %v1000
        %v1009 = vcombine.high %v984, %v1000
        %v1011 = vunpack.c.l.s4 1934713408
        %v1012 = vunpack.c.0.s8 %v1011
        %v1013 = vlaneseq
        %v1014 = vshrl.u32 %v1013, 7
        %v1015 = vsub.s32 %v1012, %v1014
        %v1016 = vrot.slane %v1008, %v1015
        %v1018 = vunpack.c.l.s4 1934713408
        %v1019 = vunpack.c.0.s8 %v1018
        %v1020 = vlaneseq
        %v1021 = vshrl.u32 %v1020, 7
        %v1022 = vsub.s32 %v1019, %v1021
        %v1023 = vrot.slane %v1009, %v1022
        %v1024 = vcombine.low %v991, %v1007
        %v1025 = vcombine.high %v991, %v1007
        %v1027 = vunpack.c.l.s4 1934713408
        %v1028 = vunpack.c.0.s8 %v1027
        %v1029 = vlaneseq
        %v1030 = vshrl.u32 %v1029, 7
        %v1031 = vsub.s32 %v1028, %v1030
        %v1032 = vrot.slane %v1024, %v1031
        %v1034 = vunpack.c.l.s4 1934713408
        %v1035 = vunpack.c.0.s8 %v1034
        %v1036 = vlaneseq
        %v1037 = vshrl.u32 %v1036, 7
        %v1038 = vsub.s32 %v1035, %v1037
        %v1039 = vrot.slane %v1025, %v1038
        %v1040 = vcombine.high %v1016, 0.0
        %v1041 = vcombine.high %v1023, 0.0
        %v1042 = vcombine.high %v1032, 0.0
        %v1043 = vcombine.high %v1039, 0.0
        %v1044 = vcombine.low %v1016, %v1023
        %v1046 = vunpack.c.l.s4 1983009808
        %v1047 = vunpack.c.0.s8 %v1046
        %v1048 = vlaneseq
        %v1049 = vshrl.u32 %v1048, 7
        %v1050 = vsub.s32 %v1047, %v1049
        %v1051 = vrot.slane %v1044, %v1050
        %v1052 = vcombine.low %v1040, %v1041
        %v1054 = vunpack.c.l.s4 1983009808
        %v1055 = vunpack.c.0.s8 %v1054
        %v1056 = vlaneseq
        %v1057 = vshrl.u32 %v1056, 7
        %v1058 = vsub.s32 %v1055, %v1057
        %v1059 = vrot.slane %v1052, %v1058
        %v1060 = vcombine.low %v1032, %v1039
        %v1062 = vunpack.c.l.s4 1983009808
        %v1063 = vunpack.c.0.s8 %v1062
        %v1064 = vlaneseq
        %v1065 = vshrl.u32 %v1064, 7
        %v1066 = vsub.s32 %v1063, %v1065
        %v1067 = vrot.slane %v1060, %v1066
        %v1068 = vcombine.low %v1042, %v1043
        %v1070 = vunpack.c.l.s4 1983009808
        %v1071 = vunpack.c.0.s8 %v1070
        %v1072 = vlaneseq
        %v1073 = vshrl.u32 %v1072, 7
        %v1074 = vsub.s32 %v1071, %v1073
        %v1075 = vrot.slane %v1068, %v1074
        %v1076 = vcombine.low %v1051, %v1059
        %v1077 = vcombine.high %v1051, %v1059
        %v1079 = vunpack.c.l.s4 1934713408
        %v1080 = vunpack.c.0.s8 %v1079
        %v1081 = vlaneseq
        %v1082 = vshrl.u32 %v1081, 7
        %v1083 = vsub.s32 %v1080, %v1082
        %v1084 = vrot.slane %v1076, %v1083
        %v1086 = vunpack.c.l.s4 1934713408
        %v1087 = vunpack.c.0.s8 %v1086
        %v1088 = vlaneseq
        %v1089 = vshrl.u32 %v1088, 7
        %v1090 = vsub.s32 %v1087, %v1089
        %v1091 = vrot.slane %v1077, %v1090
        %v1092 = vcombine.low %v1067, %v1075
        %v1093 = vcombine.high %v1067, %v1075
        %v1095 = vunpack.c.l.s4 1934713408
        %v1096 = vunpack.c.0.s8 %v1095
        %v1097 = vlaneseq
        %v1098 = vshrl.u32 %v1097, 7
        %v1099 = vsub.s32 %v1096, %v1098
        %v1100 = vrot.slane %v1092, %v1099
        %v1102 = vunpack.c.l.s4 1934713408
        %v1103 = vunpack.c.0.s8 %v1102
        %v1104 = vlaneseq
        %v1105 = vshrl.u32 %v1104, 7
        %v1106 = vsub.s32 %v1103, %v1105
        %v1107 = vrot.slane %v1093, %v1106
        %v1108 = vcombine.low %v1084, %v1100
        %v1109 = vcombine.high %v1084, %v1100
        %v1110 = vcombine.low %v1091, %v1107
        %v1111 = vcombine.high %v1091, %v1107
        %v1112 = vpack.c.bf16 %v1108, %v1108
        %v1113 = vpack.c.bf16 %v1109, %v1109
        %v1114 = vpack.c.bf16 %v1110, %v1110
        %v1115 = vpack.c.bf16 %v1111, %v1111
        %1117 = vrot.lane.b32.xlu0 %v897, 120
        %v1118 = vpop.permute.xlu0 %1117
        %1120 = vrot.lane.b32.xlu0 %v897, 112
        %v1121 = vpop.permute.xlu0 %1120
        %1123 = vrot.lane.b32.xlu0 %v897, 104
        %v1124 = vpop.permute.xlu0 %1123
        %v1126 = vcombine.low %v897, %v1121
        %v1127 = vcombine.high %v897, %v1121
        %v1129 = vunpack.c.l.s4 1983009808
        %v1130 = vunpack.c.0.s8 %v1129
        %v1131 = vlaneseq
        %v1132 = vshrl.u32 %v1131, 7
        %v1133 = vsub.s32 %v1130, %v1132
        %v1134 = vrot.slane %v1126, %v1133
        %v1136 = vunpack.c.l.s4 1983009808
        %v1137 = vunpack.c.0.s8 %v1136
        %v1138 = vlaneseq
        %v1139 = vshrl.u32 %v1138, 7
        %v1140 = vsub.s32 %v1137, %v1139
        %v1141 = vrot.slane %v1127, %v1140
        %v1142 = vcombine.low %v1118, %v1124
        %v1143 = vcombine.high %v1118, %v1124
        %v1145 = vunpack.c.l.s4 1983009808
        %v1146 = vunpack.c.0.s8 %v1145
        %v1147 = vlaneseq
        %v1148 = vshrl.u32 %v1147, 7
        %v1149 = vsub.s32 %v1146, %v1148
        %v1150 = vrot.slane %v1142, %v1149
        %v1152 = vunpack.c.l.s4 1983009808
        %v1153 = vunpack.c.0.s8 %v1152
        %v1154 = vlaneseq
        %v1155 = vshrl.u32 %v1154, 7
        %v1156 = vsub.s32 %v1153, %v1155
        %v1157 = vrot.slane %v1143, %v1156
        %v1158 = vcombine.low %v1134, %v1150
        %v1159 = vcombine.high %v1134, %v1150
        %v1161 = vunpack.c.l.s4 1934713408
        %v1162 = vunpack.c.0.s8 %v1161
        %v1163 = vlaneseq
        %v1164 = vshrl.u32 %v1163, 7
        %v1165 = vsub.s32 %v1162, %v1164
        %v1166 = vrot.slane %v1158, %v1165
        %v1168 = vunpack.c.l.s4 1934713408
        %v1169 = vunpack.c.0.s8 %v1168
        %v1170 = vlaneseq
        %v1171 = vshrl.u32 %v1170, 7
        %v1172 = vsub.s32 %v1169, %v1171
        %v1173 = vrot.slane %v1159, %v1172
        %v1174 = vcombine.low %v1141, %v1157
        %v1175 = vcombine.high %v1141, %v1157
        %v1177 = vunpack.c.l.s4 1934713408
        %v1178 = vunpack.c.0.s8 %v1177
        %v1179 = vlaneseq
        %v1180 = vshrl.u32 %v1179, 7
        %v1181 = vsub.s32 %v1178, %v1180
        %v1182 = vrot.slane %v1174, %v1181
        %v1184 = vunpack.c.l.s4 1934713408
        %v1185 = vunpack.c.0.s8 %v1184
        %v1186 = vlaneseq
        %v1187 = vshrl.u32 %v1186, 7
        %v1188 = vsub.s32 %v1185, %v1187
        %v1189 = vrot.slane %v1175, %v1188
        %v1190 = vcombine.high %v1166, 0.0
        %v1191 = vcombine.high %v1173, 0.0
        %v1192 = vcombine.high %v1182, 0.0
        %v1193 = vcombine.high %v1189, 0.0
        %v1194 = vcombine.low %v1166, %v1173
        %v1196 = vunpack.c.l.s4 1983009808
        %v1197 = vunpack.c.0.s8 %v1196
        %v1198 = vlaneseq
        %v1199 = vshrl.u32 %v1198, 7
        %v1200 = vsub.s32 %v1197, %v1199
        %v1201 = vrot.slane %v1194, %v1200
        %v1202 = vcombine.low %v1190, %v1191
        %v1204 = vunpack.c.l.s4 1983009808
        %v1205 = vunpack.c.0.s8 %v1204
        %v1206 = vlaneseq
        %v1207 = vshrl.u32 %v1206, 7
        %v1208 = vsub.s32 %v1205, %v1207
        %v1209 = vrot.slane %v1202, %v1208
        %v1210 = vcombine.low %v1182, %v1189
        %v1212 = vunpack.c.l.s4 1983009808
        %v1213 = vunpack.c.0.s8 %v1212
        %v1214 = vlaneseq
        %v1215 = vshrl.u32 %v1214, 7
        %v1216 = vsub.s32 %v1213, %v1215
        %v1217 = vrot.slane %v1210, %v1216
        %v1218 = vcombine.low %v1192, %v1193
        %v1220 = vunpack.c.l.s4 1983009808
        %v1221 = vunpack.c.0.s8 %v1220
        %v1222 = vlaneseq
        %v1223 = vshrl.u32 %v1222, 7
        %v1224 = vsub.s32 %v1221, %v1223
        %v1225 = vrot.slane %v1218, %v1224
        %v1226 = vcombine.low %v1201, %v1209
        %v1227 = vcombine.high %v1201, %v1209
        %v1229 = vunpack.c.l.s4 1934713408
        %v1230 = vunpack.c.0.s8 %v1229
        %v1231 = vlaneseq
        %v1232 = vshrl.u32 %v1231, 7
        %v1233 = vsub.s32 %v1230, %v1232
        %v1234 = vrot.slane %v1226, %v1233
        %v1236 = vunpack.c.l.s4 1934713408
        %v1237 = vunpack.c.0.s8 %v1236
        %v1238 = vlaneseq
        %v1239 = vshrl.u32 %v1238, 7
        %v1240 = vsub.s32 %v1237, %v1239
        %v1241 = vrot.slane %v1227, %v1240
        %v1242 = vcombine.low %v1217, %v1225
        %v1243 = vcombine.high %v1217, %v1225
        %v1245 = vunpack.c.l.s4 1934713408
        %v1246 = vunpack.c.0.s8 %v1245
        %v1247 = vlaneseq
        %v1248 = vshrl.u32 %v1247, 7
        %v1249 = vsub.s32 %v1246, %v1248
        %v1250 = vrot.slane %v1242, %v1249
        %v1252 = vunpack.c.l.s4 1934713408
        %v1253 = vunpack.c.0.s8 %v1252
        %v1254 = vlaneseq
        %v1255 = vshrl.u32 %v1254, 7
        %v1256 = vsub.s32 %v1253, %v1255
        %v1257 = vrot.slane %v1243, %v1256
        %v1258 = vcombine.low %v1234, %v1250
        %v1259 = vcombine.high %v1234, %v1250
        %v1260 = vcombine.low %v1241, %v1257
        %v1261 = vcombine.high %v1241, %v1257
        %v1262 = vpack.c.bf16 %v1258, %v1258
        %v1263 = vpack.c.bf16 %v1259, %v1259
        %v1264 = vpack.c.bf16 %v1260, %v1260
        %v1265 = vpack.c.bf16 %v1261, %v1261
        %1267 = vrot.lane.b32.xlu0 %v960, 120
        %v1268 = vpop.permute.xlu0 %1267
        %1270 = vrot.lane.b32.xlu0 %v960, 112
        %v1271 = vpop.permute.xlu0 %1270
        %1273 = vrot.lane.b32.xlu0 %v960, 104
        %v1274 = vpop.permute.xlu0 %1273
        %v1276 = vcombine.low %v960, %v1271
        %v1277 = vcombine.high %v960, %v1271
        %v1279 = vunpack.c.l.s4 1983009808
        %v1280 = vunpack.c.0.s8 %v1279
        %v1281 = vlaneseq
        %v1282 = vshrl.u32 %v1281, 7
        %v1283 = vsub.s32 %v1280, %v1282
        %v1284 = vrot.slane %v1276, %v1283
        %v1286 = vunpack.c.l.s4 1983009808
        %v1287 = vunpack.c.0.s8 %v1286
        %v1288 = vlaneseq
        %v1289 = vshrl.u32 %v1288, 7
        %v1290 = vsub.s32 %v1287, %v1289
        %v1291 = vrot.slane %v1277, %v1290
        %v1292 = vcombine.low %v1268, %v1274
        %v1293 = vcombine.high %v1268, %v1274
        %v1295 = vunpack.c.l.s4 1983009808
        %v1296 = vunpack.c.0.s8 %v1295
        %v1297 = vlaneseq
        %v1298 = vshrl.u32 %v1297, 7
        %v1299 = vsub.s32 %v1296, %v1298
        %v1300 = vrot.slane %v1292, %v1299
        %v1302 = vunpack.c.l.s4 1983009808
        %v1303 = vunpack.c.0.s8 %v1302
        %v1304 = vlaneseq
        %v1305 = vshrl.u32 %v1304, 7
        %v1306 = vsub.s32 %v1303, %v1305
        %v1307 = vrot.slane %v1293, %v1306
        %v1308 = vcombine.low %v1284, %v1300
        %v1309 = vcombine.high %v1284, %v1300
        %v1311 = vunpack.c.l.s4 1934713408
        %v1312 = vunpack.c.0.s8 %v1311
        %v1313 = vlaneseq
        %v1314 = vshrl.u32 %v1313, 7
        %v1315 = vsub.s32 %v1312, %v1314
        %v1316 = vrot.slane %v1308, %v1315
        %v1318 = vunpack.c.l.s4 1934713408
        %v1319 = vunpack.c.0.s8 %v1318
        %v1320 = vlaneseq
        %v1321 = vshrl.u32 %v1320, 7
        %v1322 = vsub.s32 %v1319, %v1321
        %v1323 = vrot.slane %v1309, %v1322
        %v1324 = vcombine.low %v1291, %v1307
        %v1325 = vcombine.high %v1291, %v1307
        %v1327 = vunpack.c.l.s4 1934713408
        %v1328 = vunpack.c.0.s8 %v1327
        %v1329 = vlaneseq
        %v1330 = vshrl.u32 %v1329, 7
        %v1331 = vsub.s32 %v1328, %v1330
        %v1332 = vrot.slane %v1324, %v1331
        %v1334 = vunpack.c.l.s4 1934713408
        %v1335 = vunpack.c.0.s8 %v1334
        %v1336 = vlaneseq
        %v1337 = vshrl.u32 %v1336, 7
        %v1338 = vsub.s32 %v1335, %v1337
        %v1339 = vrot.slane %v1325, %v1338
        %v1340 = vcombine.high %v1316, 0.0
        %v1341 = vcombine.high %v1323, 0.0
        %v1342 = vcombine.high %v1332, 0.0
        %v1343 = vcombine.high %v1339, 0.0
        %v1344 = vcombine.low %v1316, %v1323
        %v1346 = vunpack.c.l.s4 1983009808
        %v1347 = vunpack.c.0.s8 %v1346
        %v1348 = vlaneseq
        %v1349 = vshrl.u32 %v1348, 7
        %v1350 = vsub.s32 %v1347, %v1349
        %v1351 = vrot.slane %v1344, %v1350
        %v1352 = vcombine.low %v1340, %v1341
        %v1354 = vunpack.c.l.s4 1983009808
        %v1355 = vunpack.c.0.s8 %v1354
        %v1356 = vlaneseq
        %v1357 = vshrl.u32 %v1356, 7
        %v1358 = vsub.s32 %v1355, %v1357
        %v1359 = vrot.slane %v1352, %v1358
        %v1360 = vcombine.low %v1332, %v1339
        %v1362 = vunpack.c.l.s4 1983009808
        %v1363 = vunpack.c.0.s8 %v1362
        %v1364 = vlaneseq
        %v1365 = vshrl.u32 %v1364, 7
        %v1366 = vsub.s32 %v1363, %v1365
        %v1367 = vrot.slane %v1360, %v1366
        %v1368 = vcombine.low %v1342, %v1343
        %v1370 = vunpack.c.l.s4 1983009808
        %v1371 = vunpack.c.0.s8 %v1370
        %v1372 = vlaneseq
        %v1373 = vshrl.u32 %v1372, 7
        %v1374 = vsub.s32 %v1371, %v1373
        %v1375 = vrot.slane %v1368, %v1374
        %v1376 = vcombine.low %v1351, %v1359
        %v1377 = vcombine.high %v1351, %v1359
        %v1379 = vunpack.c.l.s4 1934713408
        %v1380 = vunpack.c.0.s8 %v1379
        %v1381 = vlaneseq
        %v1382 = vshrl.u32 %v1381, 7
        %v1383 = vsub.s32 %v1380, %v1382
        %v1384 = vrot.slane %v1376, %v1383
        %v1386 = vunpack.c.l.s4 1934713408
        %v1387 = vunpack.c.0.s8 %v1386
        %v1388 = vlaneseq
        %v1389 = vshrl.u32 %v1388, 7
        %v1390 = vsub.s32 %v1387, %v1389
        %v1391 = vrot.slane %v1377, %v1390
        %v1392 = vcombine.low %v1367, %v1375
        %v1393 = vcombine.high %v1367, %v1375
        %v1395 = vunpack.c.l.s4 1934713408
        %v1396 = vunpack.c.0.s8 %v1395
        %v1397 = vlaneseq
        %v1398 = vshrl.u32 %v1397, 7
        %v1399 = vsub.s32 %v1396, %v1398
        %v1400 = vrot.slane %v1392, %v1399
        %v1402 = vunpack.c.l.s4 1934713408
        %v1403 = vunpack.c.0.s8 %v1402
        %v1404 = vlaneseq
        %v1405 = vshrl.u32 %v1404, 7
        %v1406 = vsub.s32 %v1403, %v1405
        %v1407 = vrot.slane %v1393, %v1406
        %v1408 = vcombine.low %v1384, %v1400
        %v1409 = vcombine.high %v1384, %v1400
        %v1410 = vcombine.low %v1391, %v1407
        %v1411 = vcombine.high %v1391, %v1407
        %v1412 = vpack.c.bf16 %v1408, %v1408
        %v1413 = vpack.c.bf16 %v1409, %v1409
        %v1414 = vpack.c.bf16 %v1410, %v1410
        %v1415 = vpack.c.bf16 %v1411, %v1411
        %vm1416 = vcmask 64512
        %v1418 = vsel %vm1416, %v1112, 0
        %v1421 = vsel %vm1416, %v1262, 0
        %1423 = vmatprep.subr.bf16.mxu0 0
        %1424 = vmatpush1.bf16.xpose.msra.mxu0 %v1421
        %1425 = vmatprep.subr.bf16.mxu0 0
        %1426 = vmatpush1.bf16.xpose.msra.mxu0 0
        %1427 = vmatprep.subr.bf16.mxu0 0
        %1428 = vmatpush1.bf16.xpose.msra.mxu0 0
        %1429 = vmatprep.subr.bf16.mxu0 0
        %1430 = vmatpush1.bf16.xpose.msra.mxu0 0
        %1431 = vmatprep.subr.bf16.mxu0 0
        %1432 = vmatpush1.bf16.xpose.msra.mxu0 0
        %1433 = vmatprep.subr.bf16.mxu0 0
        %1434 = vmatpush1.bf16.xpose.msra.mxu0 0
        %1435 = vmatprep.subr.bf16.mxu0 0
        %1436 = vmatpush1.bf16.xpose.msra.mxu0 0
        %1437 = vmatprep.subr.bf16.mxu0 0
        %1438 = vmatpush1.bf16.xpose.msra.mxu0 0
        %1439 = vmatprep.subr.bf16.mxu0 0
        %1440 = vmatpush1.bf16.xpose.msra.mxu0 0
        %1441 = vmatprep.subr.bf16.mxu0 0
        %1442 = vmatpush1.bf16.xpose.msra.mxu0 0
        %1443 = vmatprep.subr.bf16.mxu0 0
        %1444 = vmatpush1.bf16.xpose.msra.mxu0 0
        %1445 = vmatprep.subr.bf16.mxu0 0
        %1446 = vmatpush1.bf16.xpose.msra.mxu0 0
        %1447 = vmatprep.subr.bf16.mxu0 0
        %1448 = vmatpush1.bf16.xpose.msra.mxu0 0
        %1449 = vmatprep.subr.bf16.mxu0 0
        %1450 = vmatpush1.bf16.xpose.msra.mxu0 0
        %1451 = vmatprep.subr.bf16.mxu0 0
        %1452 = vmatpush1.bf16.xpose.msra.mxu0 0
        %1453 = vmatprep.subr.bf16.mxu0 0
        %1454 = vmatpush1.bf16.xpose.msra.mxu0 0
        %1455 = vmatprep.mubr.bf16.mxu0 0
        %1456 = vmatmul.mubr.bf16.gmra.mrb[0].mxu0 %v1418
        %v1457 = vpop.f32.mrb[0].mxu0
        %v1458 = vadd.f32 0.0, %v1457
        %v1459 = vpop.f32.mrb[0].mxu0
        %v1460 = vpop.f32.mrb[0].mxu0
        %v1461 = vpop.f32.mrb[0].mxu0
        %1462 = vdwg.mxu0
        %v1464 = vsel %vm1416, %v1113, 0
        %v1467 = vsel %vm1416, %v1263, 0
        %1469 = vmatprep.subr.bf16.mxu0 0
        %1470 = vmatpush1.bf16.xpose.msra.mxu0 %v1467
        %1471 = vmatprep.subr.bf16.mxu0 0
        %1472 = vmatpush1.bf16.xpose.msra.mxu0 0
        %1473 = vmatprep.subr.bf16.mxu0 0
        %1474 = vmatpush1.bf16.xpose.msra.mxu0 0
        %1475 = vmatprep.subr.bf16.mxu0 0
        %1476 = vmatpush1.bf16.xpose.msra.mxu0 0
        %1477 = vmatprep.subr.bf16.mxu0 0
        %1478 = vmatpush1.bf16.xpose.msra.mxu0 0
        %1479 = vmatprep.subr.bf16.mxu0 0
        %1480 = vmatpush1.bf16.xpose.msra.mxu0 0
        %1481 = vmatprep.subr.bf16.mxu0 0
        %1482 = vmatpush1.bf16.xpose.msra.mxu0 0
        %1483 = vmatprep.subr.bf16.mxu0 0
        %1484 = vmatpush1.bf16.xpose.msra.mxu0 0
        %1485 = vmatprep.subr.bf16.mxu0 0
        %1486 = vmatpush1.bf16.xpose.msra.mxu0 0
        %1487 = vmatprep.subr.bf16.mxu0 0
        %1488 = vmatpush1.bf16.xpose.msra.mxu0 0
        %1489 = vmatprep.subr.bf16.mxu0 0
        %1490 = vmatpush1.bf16.xpose.msra.mxu0 0
        %1491 = vmatprep.subr.bf16.mxu0 0
        %1492 = vmatpush1.bf16.xpose.msra.mxu0 0
        %1493 = vmatprep.subr.bf16.mxu0 0
        %1494 = vmatpush1.bf16.xpose.msra.mxu0 0
        %1495 = vmatprep.subr.bf16.mxu0 0
        %1496 = vmatpush1.bf16.xpose.msra.mxu0 0
        %1497 = vmatprep.subr.bf16.mxu0 0
        %1498 = vmatpush1.bf16.xpose.msra.mxu0 0
        %1499 = vmatprep.subr.bf16.mxu0 0
        %1500 = vmatpush1.bf16.xpose.msra.mxu0 0
        %1501 = vmatprep.mubr.bf16.mxu0 0
        %1502 = vmatmul.mubr.bf16.gmra.mrb[0].mxu0 %v1464
        %v1503 = vpop.f32.mrb[0].mxu0
        %v1504 = vadd.f32 0.0, %v1503
        %v1505 = vpop.f32.mrb[0].mxu0
        %v1506 = vpop.f32.mrb[0].mxu0
        %v1507 = vpop.f32.mrb[0].mxu0
        %1508 = vdwg.mxu0
        %v1510 = vsel %vm1416, %v1114, 0
        %v1513 = vsel %vm1416, %v1264, 0
        %1515 = vmatprep.subr.bf16.mxu0 0
        %1516 = vmatpush1.bf16.xpose.msra.mxu0 %v1513
        %1517 = vmatprep.subr.bf16.mxu0 0
        %1518 = vmatpush1.bf16.xpose.msra.mxu0 0
        %1519 = vmatprep.subr.bf16.mxu0 0
        %1520 = vmatpush1.bf16.xpose.msra.mxu0 0
        %1521 = vmatprep.subr.bf16.mxu0 0
        %1522 = vmatpush1.bf16.xpose.msra.mxu0 0
        %1523 = vmatprep.subr.bf16.mxu0 0
        %1524 = vmatpush1.bf16.xpose.msra.mxu0 0
        %1525 = vmatprep.subr.bf16.mxu0 0
        %1526 = vmatpush1.bf16.xpose.msra.mxu0 0
        %1527 = vmatprep.subr.bf16.mxu0 0
        %1528 = vmatpush1.bf16.xpose.msra.mxu0 0
        %1529 = vmatprep.subr.bf16.mxu0 0
        %1530 = vmatpush1.bf16.xpose.msra.mxu0 0
        %1531 = vmatprep.subr.bf16.mxu0 0
        %1532 = vmatpush1.bf16.xpose.msra.mxu0 0
        %1533 = vmatprep.subr.bf16.mxu0 0
        %1534 = vmatpush1.bf16.xpose.msra.mxu0 0
        %1535 = vmatprep.subr.bf16.mxu0 0
        %1536 = vmatpush1.bf16.xpose.msra.mxu0 0
        %1537 = vmatprep.subr.bf16.mxu0 0
        %1538 = vmatpush1.bf16.xpose.msra.mxu0 0
        %1539 = vmatprep.subr.bf16.mxu0 0
        %1540 = vmatpush1.bf16.xpose.msra.mxu0 0
        %1541 = vmatprep.subr.bf16.mxu0 0
        %1542 = vmatpush1.bf16.xpose.msra.mxu0 0
        %1543 = vmatprep.subr.bf16.mxu0 0
        %1544 = vmatpush1.bf16.xpose.msra.mxu0 0
        %1545 = vmatprep.subr.bf16.mxu0 0
        %1546 = vmatpush1.bf16.xpose.msra.mxu0 0
        %1547 = vmatprep.mubr.bf16.mxu0 0
        %1548 = vmatmul.mubr.bf16.gmra.mrb[0].mxu0 %v1510
        %v1549 = vpop.f32.mrb[0].mxu0
        %v1550 = vadd.f32 0.0, %v1549
        %v1551 = vpop.f32.mrb[0].mxu0
        %v1552 = vpop.f32.mrb[0].mxu0
        %v1553 = vpop.f32.mrb[0].mxu0
        %1554 = vdwg.mxu0
        %v1556 = vsel %vm1416, %v1115, 0
        %v1559 = vsel %vm1416, %v1265, 0
        %1561 = vmatprep.subr.bf16.mxu0 0
        %1562 = vmatpush1.bf16.xpose.msra.mxu0 %v1559
        %1563 = vmatprep.subr.bf16.mxu0 0
        %1564 = vmatpush1.bf16.xpose.msra.mxu0 0
        %1565 = vmatprep.subr.bf16.mxu0 0
        %1566 = vmatpush1.bf16.xpose.msra.mxu0 0
        %1567 = vmatprep.subr.bf16.mxu0 0
        %1568 = vmatpush1.bf16.xpose.msra.mxu0 0
        %1569 = vmatprep.subr.bf16.mxu0 0
        %1570 = vmatpush1.bf16.xpose.msra.mxu0 0
        %1571 = vmatprep.subr.bf16.mxu0 0
        %1572 = vmatpush1.bf16.xpose.msra.mxu0 0
        %1573 = vmatprep.subr.bf16.mxu0 0
        %1574 = vmatpush1.bf16.xpose.msra.mxu0 0
        %1575 = vmatprep.subr.bf16.mxu0 0
        %1576 = vmatpush1.bf16.xpose.msra.mxu0 0
        %1577 = vmatprep.subr.bf16.mxu0 0
        %1578 = vmatpush1.bf16.xpose.msra.mxu0 0
        %1579 = vmatprep.subr.bf16.mxu0 0
        %1580 = vmatpush1.bf16.xpose.msra.mxu0 0
        %1581 = vmatprep.subr.bf16.mxu0 0
        %1582 = vmatpush1.bf16.xpose.msra.mxu0 0
        %1583 = vmatprep.subr.bf16.mxu0 0
        %1584 = vmatpush1.bf16.xpose.msra.mxu0 0
        %1585 = vmatprep.subr.bf16.mxu0 0
        %1586 = vmatpush1.bf16.xpose.msra.mxu0 0
        %1587 = vmatprep.subr.bf16.mxu0 0
        %1588 = vmatpush1.bf16.xpose.msra.mxu0 0
        %1589 = vmatprep.subr.bf16.mxu0 0
        %1590 = vmatpush1.bf16.xpose.msra.mxu0 0
        %1591 = vmatprep.subr.bf16.mxu0 0
        %1592 = vmatpush1.bf16.xpose.msra.mxu0 0
        %1593 = vmatprep.mubr.bf16.mxu0 0
        %1594 = vmatmul.mubr.bf16.gmra.mrb[0].mxu0 %v1556
        %v1595 = vpop.f32.mrb[0].mxu0
        %v1596 = vadd.f32 0.0, %v1595
        %v1597 = vpop.f32.mrb[0].mxu0
        %v1598 = vpop.f32.mrb[0].mxu0
        %v1599 = vpop.f32.mrb[0].mxu0
        %1600 = vdwg.mxu0
        %v1601 = vsel %vm1416, %v1458, -inf
        %1602 = vmax.xlane.f32.xlu0 %v1601
        %v1603 = vpop.xlane.xlu0 %1602
        %v1604 = vsel %vm1416, %v1504, -inf
        %1605 = vmax.xlane.f32.xlu0 %v1604
        %v1606 = vpop.xlane.xlu0 %1605
        %v1607 = vsel %vm1416, %v1550, -inf
        %1608 = vmax.xlane.f32.xlu0 %v1607
        %v1609 = vpop.xlane.xlu0 %1608
        %v1610 = vsel %vm1416, %v1596, -inf
        %1611 = vmax.xlane.f32.xlu0 %v1610
        %v1612 = vpop.xlane.xlu0 %1611
        %v1613 = vsub.f32 %v1458, %v1603
        %v1614 = vsub.f32 %v1504, %v1606
        %v1615 = vsub.f32 %v1550, %v1609
        %v1616 = vsub.f32 %v1596, %v1612
        %v1617 = vmul.f32 %v1613, 1.442695
        %v1618 = vpow.pop %v1617
        %v1619 = vmul.f32 %v1614, 1.442695
        %v1620 = vpow.pop %v1619
        %v1621 = vmul.f32 %v1615, 1.442695
        %v1622 = vpow.pop %v1621
        %v1623 = vmul.f32 %v1616, 1.442695
        %v1624 = vpow.pop %v1623
        %v1625 = vsel %vm1416, %v1618, 0.0
        %1626 = vadd.xlane.f32.xlu0 %v1625
        %v1627 = vpop.xlane.xlu0 %1626
        %v1628 = vsel %vm1416, %v1620, 0.0
        %1629 = vadd.xlane.f32.xlu0 %v1628
        %v1630 = vpop.xlane.xlu0 %1629
        %v1631 = vsel %vm1416, %v1622, 0.0
        %1632 = vadd.xlane.f32.xlu0 %v1631
        %v1633 = vpop.xlane.xlu0 %1632
        %v1634 = vsel %vm1416, %v1624, 0.0
        %1635 = vadd.xlane.f32.xlu0 %v1634
        %v1636 = vpop.xlane.xlu0 %1635
        %v1637 = vrcp.pop %v1627
        %v1638 = vrcp.pop %v1630
        %v1639 = vrcp.pop %v1633
        %v1640 = vrcp.pop %v1636
        %v1641 = vmul.f32 %v1618, %v1637
        %v1642 = vmul.f32 %v1620, %v1638
        %v1643 = vmul.f32 %v1622, %v1639
        %v1644 = vmul.f32 %v1624, %v1640
        %1645 = vst.msk [vmem:[%s734] sm:$0xff] %vm1416, %v1641
        %1646 = vst.msk [vmem:[%s734 + $0x8] sm:$0xff] %vm1416, %v1642
        %1647 = vst.msk [vmem:[%s734 + $0x10] sm:$0xff] %vm1416, %v1643
        %1648 = vst.msk [vmem:[%s734 + $0x18] sm:$0xff] %vm1416, %v1644
        %v1649 = vpack.c.bf16 %v1641, %v1641
        %v1650 = vpack.c.bf16 %v1642, %v1642
        %v1651 = vpack.c.bf16 %v1643, %v1643
        %v1652 = vpack.c.bf16 %v1644, %v1644
        %v1654 = vsel %vm1416, %v1649, 0
        %vm1656 = vcmask 1043456
        %v1658 = vsel %vm1656, %v1412, 0
        %1660 = vmatprep.subr.bf16.mxu0 0
        %1661 = vmatpush1.bf16.msra.mxu0 %v1658
        %1662 = vmatprep.subr.bf16.mxu0 0
        %1663 = vmatpush1.bf16.msra.mxu0 0
        %1664 = vmatprep.subr.bf16.mxu0 0
        %1665 = vmatpush1.bf16.msra.mxu0 0
        %1666 = vmatprep.subr.bf16.mxu0 0
        %1667 = vmatpush1.bf16.msra.mxu0 0
        %1668 = vmatprep.subr.bf16.mxu0 0
        %1669 = vmatpush1.bf16.msra.mxu0 0
        %1670 = vmatprep.subr.bf16.mxu0 0
        %1671 = vmatpush1.bf16.msra.mxu0 0
        %1672 = vmatprep.subr.bf16.mxu0 0
        %1673 = vmatpush1.bf16.msra.mxu0 0
        %1674 = vmatprep.subr.bf16.mxu0 0
        %1675 = vmatpush1.bf16.msra.mxu0 0
        %1676 = vmatprep.subr.bf16.mxu0 0
        %1677 = vmatpush1.bf16.msra.mxu0 0
        %1678 = vmatprep.subr.bf16.mxu0 0
        %1679 = vmatpush1.bf16.msra.mxu0 0
        %1680 = vmatprep.subr.bf16.mxu0 0
        %1681 = vmatpush1.bf16.msra.mxu0 0
        %1682 = vmatprep.subr.bf16.mxu0 0
        %1683 = vmatpush1.bf16.msra.mxu0 0
        %1684 = vmatprep.subr.bf16.mxu0 0
        %1685 = vmatpush1.bf16.msra.mxu0 0
        %1686 = vmatprep.subr.bf16.mxu0 0
        %1687 = vmatpush1.bf16.msra.mxu0 0
        %1688 = vmatprep.subr.bf16.mxu0 0
        %1689 = vmatpush1.bf16.msra.mxu0 0
        %1690 = vmatprep.subr.bf16.mxu0 0
        %1691 = vmatpush1.bf16.msra.mxu0 0
        %1692 = vmatprep.mubr.bf16.mxu0 0
        %1693 = vmatmul.mubr.bf16.gmra.mrb[0].mxu0 %v1654
        %v1694 = vpop.f32.mrb[0].mxu0
        %v1695 = vadd.f32 0.0, %v1694
        %v1696 = vpop.f32.mrb[0].mxu0
        %v1697 = vpop.f32.mrb[0].mxu0
        %v1698 = vpop.f32.mrb[0].mxu0
        %1699 = vdwg.mxu0
        %v1701 = vsel %vm1416, %v1650, 0
        %v1704 = vsel %vm1656, %v1413, 0
        %1706 = vmatprep.subr.bf16.mxu0 0
        %1707 = vmatpush1.bf16.msra.mxu0 %v1704
        %1708 = vmatprep.subr.bf16.mxu0 0
        %1709 = vmatpush1.bf16.msra.mxu0 0
        %1710 = vmatprep.subr.bf16.mxu0 0
        %1711 = vmatpush1.bf16.msra.mxu0 0
        %1712 = vmatprep.subr.bf16.mxu0 0
        %1713 = vmatpush1.bf16.msra.mxu0 0
        %1714 = vmatprep.subr.bf16.mxu0 0
        %1715 = vmatpush1.bf16.msra.mxu0 0
        %1716 = vmatprep.subr.bf16.mxu0 0
        %1717 = vmatpush1.bf16.msra.mxu0 0
        %1718 = vmatprep.subr.bf16.mxu0 0
        %1719 = vmatpush1.bf16.msra.mxu0 0
        %1720 = vmatprep.subr.bf16.mxu0 0
        %1721 = vmatpush1.bf16.msra.mxu0 0
        %1722 = vmatprep.subr.bf16.mxu0 0
        %1723 = vmatpush1.bf16.msra.mxu0 0
        %1724 = vmatprep.subr.bf16.mxu0 0
        %1725 = vmatpush1.bf16.msra.mxu0 0
        %1726 = vmatprep.subr.bf16.mxu0 0
        %1727 = vmatpush1.bf16.msra.mxu0 0
        %1728 = vmatprep.subr.bf16.mxu0 0
        %1729 = vmatpush1.bf16.msra.mxu0 0
        %1730 = vmatprep.subr.bf16.mxu0 0
        %1731 = vmatpush1.bf16.msra.mxu0 0
        %1732 = vmatprep.subr.bf16.mxu0 0
        %1733 = vmatpush1.bf16.msra.mxu0 0
        %1734 = vmatprep.subr.bf16.mxu0 0
        %1735 = vmatpush1.bf16.msra.mxu0 0
        %1736 = vmatprep.subr.bf16.mxu0 0
        %1737 = vmatpush1.bf16.msra.mxu0 0
        %1738 = vmatprep.mubr.bf16.mxu0 0
        %1739 = vmatmul.mubr.bf16.gmra.mrb[0].mxu0 %v1701
        %v1740 = vpop.f32.mrb[0].mxu0
        %v1741 = vadd.f32 0.0, %v1740
        %v1742 = vpop.f32.mrb[0].mxu0
        %v1743 = vpop.f32.mrb[0].mxu0
        %v1744 = vpop.f32.mrb[0].mxu0
        %1745 = vdwg.mxu0
        %v1747 = vsel %vm1416, %v1651, 0
        %v1750 = vsel %vm1656, %v1414, 0
        %1752 = vmatprep.subr.bf16.mxu0 0
        %1753 = vmatpush1.bf16.msra.mxu0 %v1750
        %1754 = vmatprep.subr.bf16.mxu0 0
        %1755 = vmatpush1.bf16.msra.mxu0 0
        %1756 = vmatprep.subr.bf16.mxu0 0
        %1757 = vmatpush1.bf16.msra.mxu0 0
        %1758 = vmatprep.subr.bf16.mxu0 0
        %1759 = vmatpush1.bf16.msra.mxu0 0
        %1760 = vmatprep.subr.bf16.mxu0 0
        %1761 = vmatpush1.bf16.msra.mxu0 0
        %1762 = vmatprep.subr.bf16.mxu0 0
        %1763 = vmatpush1.bf16.msra.mxu0 0
        %1764 = vmatprep.subr.bf16.mxu0 0
        %1765 = vmatpush1.bf16.msra.mxu0 0
        %1766 = vmatprep.subr.bf16.mxu0 0
        %1767 = vmatpush1.bf16.msra.mxu0 0
        %1768 = vmatprep.subr.bf16.mxu0 0
        %1769 = vmatpush1.bf16.msra.mxu0 0
        %1770 = vmatprep.subr.bf16.mxu0 0
        %1771 = vmatpush1.bf16.msra.mxu0 0
        %1772 = vmatprep.subr.bf16.mxu0 0
        %1773 = vmatpush1.bf16.msra.mxu0 0
        %1774 = vmatprep.subr.bf16.mxu0 0
        %1775 = vmatpush1.bf16.msra.mxu0 0
        %1776 = vmatprep.subr.bf16.mxu0 0
        %1777 = vmatpush1.bf16.msra.mxu0 0
        %1778 = vmatprep.subr.bf16.mxu0 0
        %1779 = vmatpush1.bf16.msra.mxu0 0
        %1780 = vmatprep.subr.bf16.mxu0 0
        %1781 = vmatpush1.bf16.msra.mxu0 0
        %1782 = vmatprep.subr.bf16.mxu0 0
        %1783 = vmatpush1.bf16.msra.mxu0 0
        %1784 = vmatprep.mubr.bf16.mxu0 0
        %1785 = vmatmul.mubr.bf16.gmra.mrb[0].mxu0 %v1747
        %v1786 = vpop.f32.mrb[0].mxu0
        %v1787 = vadd.f32 0.0, %v1786
        %v1788 = vpop.f32.mrb[0].mxu0
        %v1789 = vpop.f32.mrb[0].mxu0
        %v1790 = vpop.f32.mrb[0].mxu0
        %1791 = vdwg.mxu0
        %v1793 = vsel %vm1416, %v1652, 0
        %v1796 = vsel %vm1656, %v1415, 0
        %1798 = vmatprep.subr.bf16.mxu0 0
        %1799 = vmatpush1.bf16.msra.mxu0 %v1796
        %1800 = vmatprep.subr.bf16.mxu0 0
        %1801 = vmatpush1.bf16.msra.mxu0 0
        %1802 = vmatprep.subr.bf16.mxu0 0
        %1803 = vmatpush1.bf16.msra.mxu0 0
        %1804 = vmatprep.subr.bf16.mxu0 0
        %1805 = vmatpush1.bf16.msra.mxu0 0
        %1806 = vmatprep.subr.bf16.mxu0 0
        %1807 = vmatpush1.bf16.msra.mxu0 0
        %1808 = vmatprep.subr.bf16.mxu0 0
        %1809 = vmatpush1.bf16.msra.mxu0 0
        %1810 = vmatprep.subr.bf16.mxu0 0
        %1811 = vmatpush1.bf16.msra.mxu0 0
        %1812 = vmatprep.subr.bf16.mxu0 0
        %1813 = vmatpush1.bf16.msra.mxu0 0
        %1814 = vmatprep.subr.bf16.mxu0 0
        %1815 = vmatpush1.bf16.msra.mxu0 0
        %1816 = vmatprep.subr.bf16.mxu0 0
        %1817 = vmatpush1.bf16.msra.mxu0 0
        %1818 = vmatprep.subr.bf16.mxu0 0
        %1819 = vmatpush1.bf16.msra.mxu0 0
        %1820 = vmatprep.subr.bf16.mxu0 0
        %1821 = vmatpush1.bf16.msra.mxu0 0
        %1822 = vmatprep.subr.bf16.mxu0 0
        %1823 = vmatpush1.bf16.msra.mxu0 0
        %1824 = vmatprep.subr.bf16.mxu0 0
        %1825 = vmatpush1.bf16.msra.mxu0 0
        %1826 = vmatprep.subr.bf16.mxu0 0
        %1827 = vmatpush1.bf16.msra.mxu0 0
        %1828 = vmatprep.subr.bf16.mxu0 0
        %1829 = vmatpush1.bf16.msra.mxu0 0
        %1830 = vmatprep.mubr.bf16.mxu0 0
        %1831 = vmatmul.mubr.bf16.gmra.mrb[0].mxu0 %v1793
        %v1832 = vpop.f32.mrb[0].mxu0
        %v1833 = vadd.f32 0.0, %v1832
        %v1834 = vpop.f32.mrb[0].mxu0
        %v1835 = vpop.f32.mrb[0].mxu0
        %v1836 = vpop.f32.mrb[0].mxu0
        %1837 = vdwg.mxu0
        %v1838 = vcombine.low %v1695, %v1787
        %v1839 = vcombine.high %v1695, %v1787
        %v1841 = vunpack.c.l.s4 1983009808
        %v1842 = vunpack.c.0.s8 %v1841
        %v1843 = vlaneseq
        %v1844 = vshrl.u32 %v1843, 7
        %v1845 = vsub.s32 %v1842, %v1844
        %v1846 = vrot.slane %v1838, %v1845
        %v1848 = vunpack.c.l.s4 1983009808
        %v1849 = vunpack.c.0.s8 %v1848
        %v1850 = vlaneseq
        %v1851 = vshrl.u32 %v1850, 7
        %v1852 = vsub.s32 %v1849, %v1851
        %v1853 = vrot.slane %v1839, %v1852
        %v1854 = vcombine.low %v1741, %v1833
        %v1855 = vcombine.high %v1741, %v1833
        %v1857 = vunpack.c.l.s4 1983009808
        %v1858 = vunpack.c.0.s8 %v1857
        %v1859 = vlaneseq
        %v1860 = vshrl.u32 %v1859, 7
        %v1861 = vsub.s32 %v1858, %v1860
        %v1862 = vrot.slane %v1854, %v1861
        %v1864 = vunpack.c.l.s4 1983009808
        %v1865 = vunpack.c.0.s8 %v1864
        %v1866 = vlaneseq
        %v1867 = vshrl.u32 %v1866, 7
        %v1868 = vsub.s32 %v1865, %v1867
        %v1869 = vrot.slane %v1855, %v1868
        %v1870 = vcombine.low %v1846, %v1862
        %v1871 = vcombine.high %v1846, %v1862
        %v1873 = vunpack.c.l.s4 1934713408
        %v1874 = vunpack.c.0.s8 %v1873
        %v1875 = vlaneseq
        %v1876 = vshrl.u32 %v1875, 7
        %v1877 = vsub.s32 %v1874, %v1876
        %v1878 = vrot.slane %v1870, %v1877
        %v1880 = vunpack.c.l.s4 1934713408
        %v1881 = vunpack.c.0.s8 %v1880
        %v1882 = vlaneseq
        %v1883 = vshrl.u32 %v1882, 7
        %v1884 = vsub.s32 %v1881, %v1883
        %v1885 = vrot.slane %v1871, %v1884
        %v1886 = vcombine.low %v1853, %v1869
        %v1887 = vcombine.high %v1853, %v1869
        %v1889 = vunpack.c.l.s4 1934713408
        %v1890 = vunpack.c.0.s8 %v1889
        %v1891 = vlaneseq
        %v1892 = vshrl.u32 %v1891, 7
        %v1893 = vsub.s32 %v1890, %v1892
        %v1894 = vrot.slane %v1886, %v1893
        %v1896 = vunpack.c.l.s4 1934713408
        %v1897 = vunpack.c.0.s8 %v1896
        %v1898 = vlaneseq
        %v1899 = vshrl.u32 %v1898, 7
        %v1900 = vsub.s32 %v1897, %v1899
        %v1901 = vrot.slane %v1887, %v1900
        %v1902 = vcombine.high %v1878, 0.0
        %v1903 = vcombine.high %v1885, 0.0
        %v1904 = vcombine.high %v1894, 0.0
        %v1905 = vcombine.high %v1901, 0.0
        %v1906 = vcombine.low %v1878, %v1885
        %v1908 = vunpack.c.l.s4 1983009808
        %v1909 = vunpack.c.0.s8 %v1908
        %v1910 = vlaneseq
        %v1911 = vshrl.u32 %v1910, 7
        %v1912 = vsub.s32 %v1909, %v1911
        %v1913 = vrot.slane %v1906, %v1912
        %v1914 = vcombine.low %v1902, %v1903
        %v1916 = vunpack.c.l.s4 1983009808
        %v1917 = vunpack.c.0.s8 %v1916
        %v1918 = vlaneseq
        %v1919 = vshrl.u32 %v1918, 7
        %v1920 = vsub.s32 %v1917, %v1919
        %v1921 = vrot.slane %v1914, %v1920
        %v1922 = vcombine.low %v1894, %v1901
        %v1924 = vunpack.c.l.s4 1983009808
        %v1925 = vunpack.c.0.s8 %v1924
        %v1926 = vlaneseq
        %v1927 = vshrl.u32 %v1926, 7
        %v1928 = vsub.s32 %v1925, %v1927
        %v1929 = vrot.slane %v1922, %v1928
        %v1930 = vcombine.low %v1904, %v1905
        %v1932 = vunpack.c.l.s4 1983009808
        %v1933 = vunpack.c.0.s8 %v1932
        %v1934 = vlaneseq
        %v1935 = vshrl.u32 %v1934, 7
        %v1936 = vsub.s32 %v1933, %v1935
        %v1937 = vrot.slane %v1930, %v1936
        %v1938 = vcombine.low %v1913, %v1921
        %v1939 = vcombine.high %v1913, %v1921
        %v1941 = vunpack.c.l.s4 1934713408
        %v1942 = vunpack.c.0.s8 %v1941
        %v1943 = vlaneseq
        %v1944 = vshrl.u32 %v1943, 7
        %v1945 = vsub.s32 %v1942, %v1944
        %v1946 = vrot.slane %v1938, %v1945
        %v1948 = vunpack.c.l.s4 1934713408
        %v1949 = vunpack.c.0.s8 %v1948
        %v1950 = vlaneseq
        %v1951 = vshrl.u32 %v1950, 7
        %v1952 = vsub.s32 %v1949, %v1951
        %v1953 = vrot.slane %v1939, %v1952
        %v1954 = vcombine.low %v1929, %v1937
        %v1955 = vcombine.high %v1929, %v1937
        %v1957 = vunpack.c.l.s4 1934713408
        %v1958 = vunpack.c.0.s8 %v1957
        %v1959 = vlaneseq
        %v1960 = vshrl.u32 %v1959, 7
        %v1961 = vsub.s32 %v1958, %v1960
        %v1962 = vrot.slane %v1954, %v1961
        %v1964 = vunpack.c.l.s4 1934713408
        %v1965 = vunpack.c.0.s8 %v1964
        %v1966 = vlaneseq
        %v1967 = vshrl.u32 %v1966, 7
        %v1968 = vsub.s32 %v1965, %v1967
        %v1969 = vrot.slane %v1955, %v1968
        %v1970 = vcombine.low %v1946, %v1962
        %v1971 = vcombine.high %v1946, %v1962
        %v1972 = vcombine.low %v1953, %v1969
        %v1973 = vcombine.high %v1953, %v1969
        %1975 = vrot.lane.b32.xlu0 %v1971, 8
        %v1976 = vpop.permute.xlu0 %1975
        %1979 = vrot.lane.b32.xlu0 %v1972, 16
        %v1980 = vpop.permute.xlu0 %1979
        %1983 = vrot.lane.b32.xlu0 %v1973, 24
        %v1984 = vpop.permute.xlu0 %1983
        %v1986 = vsel %vm1416, %v1970, %v1976
        %vm1987 = vcmask 130048
        %v1988 = vsel %vm1987, %v1986, %v1980
        %vm1989 = vcmask 195584
        %v1990 = vsel %vm1989, %v1988, %v1984
        %v1991 = vpack.c.bf16 %v1990, %v1990
        %v1992 = vld [vmem:[%s9] sm:$0xf]
        %v1993 = vld [vmem:[%s9 + $0x4] sm:$0xf]
        %v1994 = vld [vmem:[%s9 + $0x8] sm:$0xf]
        %v1995 = vld [vmem:[%s9 + $0xc] sm:$0xf]
        %v1996 = vld [vmem:[#allocation11] sm:$0x1]
        %v1998 = vlaneseq
        %v1999 = vshrl.u32 %v1998, 7
        %v2000 = vsub.s32 0, %v1999
        %v2001 = vrot.slane %v1996, %v2000
        %v2007 = vunpack.c.l.b16 %v1992
        %v2008 = vunpack.c.l.b16 %v1993
        %v2009 = vunpack.c.l.b16 %v1994
        %v2010 = vunpack.c.l.b16 %v1995
        %v2011 = vpack.c.b16 %v2008, %v2007
        %v2012 = vpack.c.b16 %v2010, %v2009
        %v2016 = vsel %vm743, %v1991, 0
        %2018 = vmatprep.subr.bf16.mxu0 0
        %2019 = vmatpush1.bf16.msra.mxu0 %v2011
        %2020 = vmatprep.subr.bf16.mxu0 0
        %2021 = vmatpush1.bf16.msra.mxu0 %v2012
        %2022 = vmatprep.subr.bf16.mxu0 0
        %2023 = vmatpush1.bf16.msra.mxu0 0
        %2024 = vmatprep.subr.bf16.mxu0 0
        %2025 = vmatpush1.bf16.msra.mxu0 0
        %2026 = vmatprep.subr.bf16.mxu0 0
        %2027 = vmatpush1.bf16.msra.mxu0 0
        %2028 = vmatprep.subr.bf16.mxu0 0
        %2029 = vmatpush1.bf16.msra.mxu0 0
        %2030 = vmatprep.subr.bf16.mxu0 0
        %2031 = vmatpush1.bf16.msra.mxu0 0
        %2032 = vmatprep.subr.bf16.mxu0 0
        %2033 = vmatpush1.bf16.msra.mxu0 0
        %2034 = vmatprep.subr.bf16.mxu0 0
        %2035 = vmatpush1.bf16.msra.mxu0 0
        %2036 = vmatprep.subr.bf16.mxu0 0
        %2037 = vmatpush1.bf16.msra.mxu0 0
        %2038 = vmatprep.subr.bf16.mxu0 0
        %2039 = vmatpush1.bf16.msra.mxu0 0
        %2040 = vmatprep.subr.bf16.mxu0 0
        %2041 = vmatpush1.bf16.msra.mxu0 0
        %2042 = vmatprep.subr.bf16.mxu0 0
        %2043 = vmatpush1.bf16.msra.mxu0 0
        %2044 = vmatprep.subr.bf16.mxu0 0
        %2045 = vmatpush1.bf16.msra.mxu0 0
        %2046 = vmatprep.subr.bf16.mxu0 0
        %2047 = vmatpush1.bf16.msra.mxu0 0
        %2048 = vmatprep.subr.bf16.mxu0 0
        %2049 = vmatpush1.bf16.msra.mxu0 0
        %2050 = vmatprep.mubr.bf16.mxu0 0
        %2051 = vmatmul.mubr.bf16.gmra.mrb[0].mxu0 %v2016
        %v2052 = vpop.f32.mrb[0].mxu0
        %v2053 = vadd.f32 %v2001, %v2052
        %v2054 = vpop.f32.mrb[0].mxu0
        %v2055 = vpop.f32.mrb[0].mxu0
        %v2056 = vpop.f32.mrb[0].mxu0
        %2057 = vdwg.mxu0
        %v2058 = vadd.f32 %v740, %v2053
        %v2059 = vld [vmem:[#allocation13] sm:$0x1]
        %v2060 = vld [vmem:[#allocation14] sm:$0x1]
        %v2061 = vsel %vm743, %v2058, 0.0
        %2062 = vadd.xlane.f32.xlu0 %v2061
        %v2063 = vpop.xlane.xlu0 %2062
        %v2064 = vmul.f32 %v2063, %v747
        %v2065 = vsub.f32 %v2058, %v2064
        %v2066 = vmul.f32 %v2065, %v2065
        %v2067 = vsel %vm743, %v2066, 0.0
        %2068 = vadd.xlane.f32.xlu0 %v2067
        %v2069 = vpop.xlane.xlu0 %2068
        %v2070 = vmul.f32 %v2069, %v747
        %v2071 = vadd.f32 %v2070, 1e-06
        %v2072 = vrsqrt.pop %v2071
        %v2073 = vmul.f32 %v2065, %v2072
        %v2075 = vlaneseq
        %v2076 = vshrl.u32 %v2075, 7
        %v2077 = vsub.s32 0, %v2076
        %v2078 = vrot.slane %v2059, %v2077
        %v2080 = vmul.f32 %v2073, %v2078
        %v2082 = vlaneseq
        %v2083 = vshrl.u32 %v2082, 7
        %v2084 = vsub.s32 0, %v2083
        %v2085 = vrot.slane %v2060, %v2084
        %v2087 = vadd.f32 %v2080, %v2085
        %v2088 = vpack.c.bf16 %v2087, %v2087
        %v2089 = vld [vmem:[%s13] sm:$0xf]
        %v2090 = vld [vmem:[%s13 + $0x4] sm:$0xf]
        %v2091 = vld [vmem:[%s13 + $0x8] sm:$0xf]
        %v2092 = vld [vmem:[%s13 + $0xc] sm:$0xf]
        %v2093 = vld [vmem:[%s14] sm:$0x1]
        %v2095 = vlaneseq
        %v2096 = vshrl.u32 %v2095, 7
        %v2097 = vsub.s32 0, %v2096
        %v2098 = vrot.slane %v2093, %v2097
        %v2104 = vunpack.c.l.b16 %v2089
        %v2105 = vunpack.c.l.b16 %v2090
        %v2106 = vunpack.c.l.b16 %v2091
        %v2107 = vunpack.c.l.b16 %v2092
        %v2108 = vpack.c.b16 %v2105, %v2104
        %v2109 = vpack.c.b16 %v2107, %v2106
        %v2113 = vsel %vm743, %v2088, 0
        %2115 = vmatprep.subr.bf16.mxu0 0
        %2116 = vmatpush1.bf16.msra.mxu0 %v2108
        %2117 = vmatprep.subr.bf16.mxu0 0
        %2118 = vmatpush1.bf16.msra.mxu0 %v2109
        %2119 = vmatprep.subr.bf16.mxu0 0
        %2120 = vmatpush1.bf16.msra.mxu0 0
        %2121 = vmatprep.subr.bf16.mxu0 0
        %2122 = vmatpush1.bf16.msra.mxu0 0
        %2123 = vmatprep.subr.bf16.mxu0 0
        %2124 = vmatpush1.bf16.msra.mxu0 0
        %2125 = vmatprep.subr.bf16.mxu0 0
        %2126 = vmatpush1.bf16.msra.mxu0 0
        %2127 = vmatprep.subr.bf16.mxu0 0
        %2128 = vmatpush1.bf16.msra.mxu0 0
        %2129 = vmatprep.subr.bf16.mxu0 0
        %2130 = vmatpush1.bf16.msra.mxu0 0
        %2131 = vmatprep.subr.bf16.mxu0 0
        %2132 = vmatpush1.bf16.msra.mxu0 0
        %2133 = vmatprep.subr.bf16.mxu0 0
        %2134 = vmatpush1.bf16.msra.mxu0 0
        %2135 = vmatprep.subr.bf16.mxu0 0
        %2136 = vmatpush1.bf16.msra.mxu0 0
        %2137 = vmatprep.subr.bf16.mxu0 0
        %2138 = vmatpush1.bf16.msra.mxu0 0
        %2139 = vmatprep.subr.bf16.mxu0 0
        %2140 = vmatpush1.bf16.msra.mxu0 0
        %2141 = vmatprep.subr.bf16.mxu0 0
        %2142 = vmatpush1.bf16.msra.mxu0 0
        %2143 = vmatprep.subr.bf16.mxu0 0
        %2144 = vmatpush1.bf16.msra.mxu0 0
        %2145 = vmatprep.subr.bf16.mxu0 0
        %2146 = vmatpush1.bf16.msra.mxu0 0
        %2147 = vmatprep.mubr.bf16.mxu0 0
        %2148 = vmatmul.mubr.bf16.gmra.mrb[0].mxu0 %v2113
        %v2149 = vpop.f32.mrb[0].mxu0
        %v2150 = vadd.f32 %v2098, %v2149
        %v2151 = vpop.f32.mrb[0].mxu0
        %v2152 = vpop.f32.mrb[0].mxu0
        %v2153 = vpop.f32.mrb[0].mxu0
        %2154 = vdwg.mxu0
        %v2155 = vmul.f32 %v2150, 0.5
        %v2156 = vmul.f32 %v2150, 0.70710677
        %vm2157 = vcmp.ge.f32.partialorder %v2156, 0.0
        %v2158 = vsel %vm2157, 1.0, -1.0
        %v2159 = vand.u32 2147483647, %v2156
        %v2160 = vmul.f32 %v2159, 0.3275911
        %v2161 = vadd.f32 %v2160, 1.0
        %v2162 = vrcp.pop %v2161
        %v2163 = vmul.f32 %v2162, 1.0614054
        %v2164 = vadd.f32 %v2163, -1.4531521
        %v2165 = vmul.f32 %v2162, %v2164
        %v2166 = vadd.f32 %v2165, 1.4214138
        %v2167 = vmul.f32 %v2162, %v2166
        %v2168 = vadd.f32 %v2167, -0.28449672
        %v2169 = vmul.f32 %v2162, %v2168
        %v2170 = vadd.f32 %v2169, 0.2548296
        %v2171 = vmul.f32 %v2162, %v2170
        %v2172 = vsub.f32 0.0, %v2159
        %v2173 = vmul.f32 %v2172, %v2159
        %v2174 = vmul.f32 %v2173, 1.442695
        %v2175 = vpow.pop %v2174
        %v2176 = vmul.f32 %v2171, %v2175
        %v2177 = vsub.f32 1.0, %v2176
        %v2178 = vmul.f32 %v2158, %v2177
        %v2179 = vadd.f32 %v2178, 1.0
        %v2180 = vmul.f32 %v2155, %v2179
        %v2181 = vpack.c.bf16 %v2180, %v2180
        %v2182 = vld [vmem:[%s15] sm:$0xf]
        %v2183 = vld [vmem:[%s15 + $0x4] sm:$0xf]
        %v2184 = vld [vmem:[%s15 + $0x8] sm:$0xf]
        %v2185 = vld [vmem:[%s15 + $0xc] sm:$0xf]
        %v2186 = vld [vmem:[%s15 + $0x10] sm:$0xf]
        %v2187 = vld [vmem:[%s15 + $0x14] sm:$0xf]
        %v2188 = vld [vmem:[%s15 + $0x18] sm:$0xf]
        %v2189 = vld [vmem:[%s15 + $0x1c] sm:$0xf]
        %v2190 = vld [vmem:[%s16] sm:$0x1]
        %v2192 = vlaneseq
        %v2193 = vshrl.u32 %v2192, 7
        %v2194 = vsub.s32 0, %v2193
        %v2195 = vrot.slane %v2190, %v2194
        %v2205 = vunpack.c.l.b16 %v2182
        %v2206 = vunpack.c.l.b16 %v2183
        %v2207 = vunpack.c.l.b16 %v2184
        %v2208 = vunpack.c.l.b16 %v2185
        %v2209 = vunpack.c.l.b16 %v2186
        %v2210 = vunpack.c.l.b16 %v2187
        %v2211 = vunpack.c.l.b16 %v2188
        %v2212 = vunpack.c.l.b16 %v2189
        %v2213 = vpack.c.b16 %v2206, %v2205
        %v2214 = vpack.c.b16 %v2208, %v2207
        %v2215 = vpack.c.b16 %v2210, %v2209
        %v2216 = vpack.c.b16 %v2212, %v2211
        %vm2221 = vcmask 523264
        %v2223 = vsel %vm2221, %v2181, 0
        %2225 = vmatprep.subr.bf16.mxu0 0
        %2226 = vmatpush1.bf16.msra.mxu0 %v2213
        %2227 = vmatprep.subr.bf16.mxu0 0
        %2228 = vmatpush1.bf16.msra.mxu0 %v2214
        %2229 = vmatprep.subr.bf16.mxu0 0
        %2230 = vmatpush1.bf16.msra.mxu0 %v2215
        %2231 = vmatprep.subr.bf16.mxu0 0
        %2232 = vmatpush1.bf16.msra.mxu0 %v2216
        %2233 = vmatprep.subr.bf16.mxu0 0
        %2234 = vmatpush1.bf16.msra.mxu0 0
        %2235 = vmatprep.subr.bf16.mxu0 0
        %2236 = vmatpush1.bf16.msra.mxu0 0
        %2237 = vmatprep.subr.bf16.mxu0 0
        %2238 = vmatpush1.bf16.msra.mxu0 0
        %2239 = vmatprep.subr.bf16.mxu0 0
        %2240 = vmatpush1.bf16.msra.mxu0 0
        %2241 = vmatprep.subr.bf16.mxu0 0
        %2242 = vmatpush1.bf16.msra.mxu0 0
        %2243 = vmatprep.subr.bf16.mxu0 0
        %2244 = vmatpush1.bf16.msra.mxu0 0
        %2245 = vmatprep.subr.bf16.mxu0 0
        %2246 = vmatpush1.bf16.msra.mxu0 0
        %2247 = vmatprep.subr.bf16.mxu0 0
        %2248 = vmatpush1.bf16.msra.mxu0 0
        %2249 = vmatprep.subr.bf16.mxu0 0
        %2250 = vmatpush1.bf16.msra.mxu0 0
        %2251 = vmatprep.subr.bf16.mxu0 0
        %2252 = vmatpush1.bf16.msra.mxu0 0
        %2253 = vmatprep.subr.bf16.mxu0 0
        %2254 = vmatpush1.bf16.msra.mxu0 0
        %2255 = vmatprep.subr.bf16.mxu0 0
        %2256 = vmatpush1.bf16.msra.mxu0 0
        %2257 = vmatprep.mubr.bf16.mxu0 0
        %2258 = vmatmul.mubr.bf16.gmra.mrb[0].mxu0 %v2223
        %v2259 = vpop.f32.mrb[0].mxu0
        %v2260 = vadd.f32 %v2195, %v2259
        %v2261 = vpop.f32.mrb[0].mxu0
        %v2262 = vpop.f32.mrb[0].mxu0
        %v2263 = vpop.f32.mrb[0].mxu0
        %2264 = vdwg.mxu0
        %v2265 = vadd.f32 %v2058, %v2260
        %2266 = vst.msk [vmem:[%s727] sm:$0xff] %vm743, %v2265
        %s2267 = sand.u32 %s455, 1
        %s2268 = scalar_lea.sflag [#allocation4], %s2267
        %s2269 = sand.u32 %s455, 1
        %s2270 = smul.addr %s2269, 8
        %s2271 = scalar_lea.vmem [#allocation16], %s2270
        %s2272 = sand.u32 %s481, 1
        %s2273 = scalar_lea.sflag [#allocation18], %s2272
        %s2274 = sand.u32 %s481, 1
        %s2275 = smul.addr %s2274, 32
        %s2276 = scalar_lea.vmem [#allocation17], %s2275
        // Predicated region
        $region129: #{tpu_custom_call.1} parent=95 // pred_check
          %p2277 = pneg %p465
        $region130: #{tpu_custom_call.1} parent=95 // pred_check_branch
          %2279 = sbr.rel (%p2277) target = $region132
        $region131: #{tpu_custom_call.1} parent=95 // pred_region
          %s2281 = ssub.s32 128, 128
          %2282 = vsyncadd %s2268, %s2281
          %s2283 = smul.addr %s43, 128
          %s2284 = scalar_lea.hbm %s19, %s2283
          %s2286 = sshll.u32 %s2271, 4
          %s2287 = int_to_ptr.vmem [resolvable:$true] %s2286
          %2289 = dma.vmem_to_hbm [thread:$0]  %s2287, 128, %s2284, %s2268
        $region132: #{tpu_custom_call.1} parent=95 // pred_fallthru
          _
        // Predicated region
        $region133: #{tpu_custom_call.1} parent=95 // pred_check
          %p2290 = pneg %p491
        $region134: #{tpu_custom_call.1} parent=95 // pred_check_branch
          %2292 = sbr.rel (%p2290) target = $region136
        $region135: #{tpu_custom_call.1} parent=95 // pred_region
          %s2294 = ssub.s32 512, 512
          %2295 = vsyncadd %s2273, %s2294
          %s2296 = smul.addr %s43, 4
          %s2297 = smul.addr %s2296, 128
          %s2298 = scalar_lea.hbm %s20, %s2297
          %s2299 = sshll.u32 %s2276, 4
          %s2300 = int_to_ptr.vmem [resolvable:$true] %s2299
          %2305 = dma.vmem_to_hbm [thread:$0]  %s2300, 512, %s2298, %s2273, 128, 128, 8
        $region136: #{tpu_custom_call.1} parent=95 // pred_fallthru
          _
      $region96: #{tpu_custom_call.1} parent=5 // pred_fallthru
        _
      %p2306 = scmp.le.s32.totalorder 2, %s38
      // Predicated region
      $region137: #{tpu_custom_call.1} parent=5 // pred_check
        %p2307 = pneg %p2306
      $region138: #{tpu_custom_call.1} parent=5 // pred_check_branch
        %2309 = sbr.rel (%p2307) target = $region140
      $region139: #{tpu_custom_call.1} parent=5 // pred_region
        %s2310 = ssub.s32 %s38, 2
        // Predicated region
        $region141: #{tpu_custom_call.1} parent=139 // pred_check
          %p2311 = pneg %p471
        $region142: #{tpu_custom_call.1} parent=139 // pred_check_branch
          %2313 = sbr.rel (%p2311) target = $region144
        $region143: #{tpu_custom_call.1} parent=139 // pred_region
          %s2314 = sand.u32 %s456, 1
          %s2315 = scalar_lea.sflag [#allocation4], %s2314
          %s2316 = sand.u32 %s456, 1
          %s2317 = smul.addr %s2316, 8
          %s2318 = scalar_lea.vmem [#allocation16], %s2317
          %2319 = dma.done %s2315, 128
        $region144: #{tpu_custom_call.1} parent=139 // pred_fallthru
          _
        // Predicated region
        $region145: #{tpu_custom_call.1} parent=139 // pred_check
          %p2320 = pneg %p497
        $region146: #{tpu_custom_call.1} parent=139 // pred_check_branch
          %2322 = sbr.rel (%p2320) target = $region148
        $region147: #{tpu_custom_call.1} parent=139 // pred_region
          %s2323 = sand.u32 %s482, 1
          %s2324 = scalar_lea.sflag [#allocation18], %s2323
          %s2325 = sand.u32 %s482, 1
          %s2326 = smul.addr %s2325, 32
          %s2327 = scalar_lea.vmem [#allocation17], %s2326
          %2328 = dma.done %s2324, 512
        $region148: #{tpu_custom_call.1} parent=139 // pred_fallthru
          _
      $region140: #{tpu_custom_call.1} parent=5 // pred_fallthru
        _
    $region6: #{tpu_custom_call.1} parent=1 // loop_footer
      %s42 = sadd.s32 1, %s38
    $region7: #{tpu_custom_call.1} parent=1 // loop_footer_branch
      %37 = sbr.rel target = $region3
    $region8: #{tpu_custom_call.1} parent=1 // loop_exit
      _
    %2329 = vsyncpa [#allocation3], 1
    %s2330 = scalar_lea.sflag [#allocation3], 1
    %2331 = vsyncpa %s2330, 1
    %2332 = vsyncpa [#allocation6], 1
    %2333 = vsyncpa [#allocation9], 1
    %2334 = vsyncpa [#allocation12], 1
    %2335 = vsyncpa [#allocation15], 1
    %2336 = vsyncpa [#allocation4], 1
    %s2337 = scalar_lea.sflag [#allocation4], 1
    %2338 = vsyncpa %s2337, 1
    %2339 = vsyncpa [#allocation18], 1
    %s2340 = scalar_lea.sflag [#allocation18], 1
    %2341 = vsyncpa %s2340, 1

</llo_original>
